<compile_context>
chip_gen: v5e
topology: v5e:2x2
jax: 0.10.0
libtpu: 0.0.40
codegen_flags: <defaults>
</compile_context>

<pallas_src>
import functools

import jax
import jax.numpy as jnp
from jax.experimental import pallas as pl
from jax.experimental.pallas import tpu as pltpu


def _round_up(x, m):
    return (x + m - 1) // m * m


def _conv_bn_relu_kernel(x_ref, w_ref, b_ref, o_ref, *, apply_relu: bool):
    """One (batch n, row-band i) grid step: conv + folded bias + ReLU.

    x_ref: (Hp, Wp, Cin)       whole padded image, bf16 (resident across row bands)
    w_ref: (KH, KW, Cin, Cout) BN-folded weights, bf16
    b_ref: (1, Cout)           folded bias, f32
    o_ref: (TH, Wo, Cout)      one output row band, f32
    """
    Hp, Wp, Cin = x_ref.shape
    KH, KW, _, Cout = w_ref.shape
    TH, Wo, _ = o_ref.shape

    THb = TH + KH - 1          # input rows needed for TH output rows
    Mb = THb * Wp              # merged (row, col) extent of the input band
    Mo = TH * Wp               # merged extent of the output band (before W crop)

    i = pl.program_id(1)
    row0 = pl.multiple_of(i * TH, TH)

    # Slice only along H (a leading, untiled dim -> cheap) and merge (H, W).
    # Wp is padded to a multiple of 8 in the wrapper so this reshape is layout-free.
    band = x_ref[pl.ds(row0, THb), :, :].reshape(Mb, Cin)

    acc = None
    for kw in range(KW):
        part = None
        for kh in range(KH):
            # 8-aligned static slice along the merged row axis (start = kh * Wp).
            lhs = band[kh * Wp:kh * Wp + Mo, :]
            c = jnp.dot(lhs, w_ref[kh, kw], preferred_element_type=jnp.float32)
            part = c if part is None else part + c
        if kw:
            # Realize the kw column shift with an XLU roll instead of an unaligned
            # sublane slice.  Wrapped-around values only land in columns >= W_out,
            # which the wrapper slices off.
            part = pltpu.roll(part, Mo - kw, axis=0)
        acc = part if acc is None else acc + part

    acc = acc + b_ref[...]                                   # (Mo, Cout) + (1, Cout)
    if apply_relu:
        acc = jnp.maximum(acc, 0.0)
    o_ref[...] = acc.reshape(TH, Wp, Cout)[:, :Wo, :].astype(o_ref.dtype)


def basic_conv_forward(x_nchw, weight, conv_bias, bn_params, *, stride=1, padding=1,
                       dilation=1, groups=1, relu=True, eps=1e-5):
    """Forward pass of basic_conv.

    x_nchw:    (N, Cin, H, W)      float32
    weight:    (Cout, Cin, KH, KW) float32  (PyTorch conv weight layout)
    conv_bias: (Cout,) float32 or None
    bn_params: (gamma, beta, running_mean, running_var), each (Cout,), or None
    returns:   (N, Cout, H_out, W_out) float32 (NCHW, matching PyTorch)
    """
    assert stride == 1 and dilation == 1 and groups == 1, (
        "Pallas basic_conv kernel only implements stride=1, dilation=1, groups=1")
    N, Cin, H, W = x_nchw.shape
    Cout, _, KH, KW = weight.shape

    # ---- fold conv bias + eval-mode BN into per-output-channel scale / bias ----------
    if conv_bias is None:
        conv_bias = jnp.zeros((Cout,), jnp.float32)
    if bn_params is not None:
        gamma, beta, r_mean, r_var = bn_params
        scale = gamma / jnp.sqrt(r_var + eps)                       # (Cout,)
        folded_bias = (conv_bias - r_mean) * scale + beta           # (Cout,)
    else:
        scale = jnp.ones((Cout,), jnp.float32)
        folded_bias = conv_bias
    w_folded = weight * scale[:, None, None, None]                  # (Cout,Cin,KH,KW)

    # ---- sizes / padding to TPU-friendly extents --------------------------------------
    Hp0, Wp0 = H + 2 * padding, W + 2 * padding
    H_out, W_out = Hp0 - KH + 1, Wp0 - KW + 1

    Cin_p = _round_up(Cin, 128)          # matmul K axis (lanes)
    Cout_p = _round_up(Cout, 128)        # lane axis of the output stores
    Wp = _round_up(Wp0, 8)               # input sublane axis -> free reshapes
    W_out_p = _round_up(W_out, 8)        # output sublane axis -> unmasked stores

    TH = 8                               # output rows per grid step
    while TH > 1 and TH * Wp * Cout_p * 4 > (2 << 20):   # bound the f32 accumulator
        TH //= 2
    H_out_p = _round_up(H_out, TH)
    Hp = H_out_p + KH - 1                # >= Hp0; extra rows are zero halo

    # ---- layout plumbing: NCHW -> NHWC, pad (conv halo + alignment), bf16 cast --------
    # TODO(synk): in a full CTPN pipeline keep activations NHWC end-to-end so these
    #             transposes/pads do not cost an extra HBM round trip per layer.
    x_nhwc = jnp.transpose(x_nchw, (0, 2, 3, 1))
    x_pad = jnp.pad(
        x_nhwc,
        ((0, 0), (padding, Hp - H - padding), (padding, Wp - W - padding),
         (0, Cin_p - Cin))).astype(jnp.bfloat16)
    w_hwio = jnp.transpose(w_folded, (2, 3, 1, 0))                  # (KH,KW,Cin,Cout)
    w_pad = jnp.pad(w_hwio, ((0, 0), (0, 0), (0, Cin_p - Cin),
                             (0, Cout_p - Cout))).astype(jnp.bfloat16)
    b_pad = jnp.pad(folded_bias, (0, Cout_p - Cout)).reshape(1, Cout_p).astype(jnp.float32)

    grid = (N, H_out_p // TH)

    # VMEM budget: double-buffered blocks + in-kernel working set, with generous headroom.
    x_blk = Hp * Wp * Cin_p * 2
    w_blk = KH * KW * Cin_p * Cout_p * 2
    o_blk = TH * W_out_p * Cout_p * 4
    work = (TH + KH - 1) * Wp * Cin_p * 2 + 3 * TH * Wp * Cout_p * 4
    vmem_limit = int(min(48 << 20, 2 * (2 * (x_blk + w_blk + o_blk) + work) + (8 << 20)))

    cost = pl.CostEstimate(
        flops=2 * N * H_out * W_out * KH * KW * Cin * Cout,
        transcendentals=0,
        bytes_accessed=(x_pad.size * 2 + w_pad.size * 2 + b_pad.size * 4
                        + N * H_out_p * W_out_p * Cout_p * 4))

    out = pl.pallas_call(
        functools.partial(_conv_bn_relu_kernel, apply_relu=relu),
        out_shape=jax.ShapeDtypeStruct((N, H_out_p, W_out_p, Cout_p), jnp.float32),
        grid_spec=pltpu.PrefetchScalarGridSpec(
            num_scalar_prefetch=0,
            grid=grid,
            in_specs=[
                # Whole padded image per batch element; block index depends only on n,
                # so it is DMA'd once and stays resident across the row-band axis.
                pl.BlockSpec((None, Hp, Wp, Cin_p), lambda n, i: (n, 0, 0, 0)),
                pl.BlockSpec((KH, KW, Cin_p, Cout_p), lambda n, i: (0, 0, 0, 0)),
                pl.BlockSpec((1, Cout_p), lambda n, i: (0, 0)),
            ],
            out_specs=pl.BlockSpec((None, TH, W_out_p, Cout_p),
                                   lambda n, i: (n, i, 0, 0)),
        ),
        compiler_params=pltpu.CompilerParams(
            dimension_semantics=("parallel", "parallel"),
            vmem_limit_bytes=vmem_limit),
        cost_estimate=cost,
    )(x_pad, w_pad, b_pad)

    out = out[:, :H_out, :W_out, :Cout]                     # strip alignment padding
    return jnp.transpose(out, (0, 3, 1, 2))                 # back to PyTorch NCHW


def _reference(x_nchw, weight, conv_bias, bn_params, *, padding=1, relu=True, eps=1e-5):
    """Pure-JAX f32 reference (lax conv) for the correctness check."""
    out = jax.lax.conv_general_dilated(
        x_nchw, weight, window_strides=(1, 1),
        padding=[(padding, padding), (padding, padding)],
        dimension_numbers=("NCHW", "OIHW", "NCHW"))
    out = out + conv_bias[None, :, None, None]
    if bn_params is not None:
        gamma, beta, r_mean, r_var = bn_params
        out = (out - r_mean[None, :, None, None]) / jnp.sqrt(
            r_var[None, :, None, None] + eps)
        out = out * gamma[None, :, None, None] + beta[None, :, None, None]
    if relu:
        out = jnp.maximum(out, 0.0)
    return out


if __name__ == "__main__":
    # basic_conv(chan_in=4, chan_out=8, kernel_size=3, stride=1, padding=1, bn=True, relu=True)
    N, Cin, H, W = 2, 4, 16, 16
    Cout, KH, KW = 8, 3, 3
    padding = 1

    key = jax.random.PRNGKey(0)
    kx, kwt, kb = jax.random.split(key, 3)

    x = jax.random.normal(kx, (N, Cin, H, W), dtype=jnp.float32)
    weight = jax.random.normal(kwt, (Cout, Cin, KH, KW), dtype=jnp.float32) * 0.1
    conv_bias = jax.random.normal(kb, (Cout,), dtype=jnp.float32) * 0.1

    # Deterministic BatchNorm (eval-mode) parameters.
    gamma = jnp.linspace(0.5, 1.5, Cout, dtype=jnp.float32)
    beta = jnp.linspace(-0.2, 0.2, Cout, dtype=jnp.float32)
    running_mean = jnp.linspace(-0.1, 0.1, Cout, dtype=jnp.float32)
    running_var = jnp.linspace(0.8, 1.2, Cout, dtype=jnp.float32)
    bn_params = (gamma, beta, running_mean, running_var)

    out = basic_conv_forward(x, weight, conv_bias, bn_params,
                             padding=padding, relu=True)
    out = jax.block_until_ready(out)

    ref = _reference(x, weight, conv_bias, bn_params, padding=padding, relu=True)
    assert out.shape == (N, Cout, H, W), out.shape
    max_err = float(jnp.max(jnp.abs(out - ref)))
    # bf16 activations/weights with f32 accumulation -> widened tolerance vs f32 reference.
    assert max_err < 1e-1, max_err

    print("KERNEL_OK")
</pallas_src>

<mosaic_0001>
module attributes {stable_mosaic.version = 11 : i64} {
  func.func @_conv_bn_relu_kernel(%arg0: i32, %arg1: i32, %arg2: memref<1x18x24x128xbf16, #tpu.memory_space<vmem>>, %arg3: memref<3x3x128x128xbf16, #tpu.memory_space<vmem>>, %arg4: memref<1x128xf32, #tpu.memory_space<vmem>>, %arg5: memref<1x8x16x128xf32, #tpu.memory_space<vmem>>) attributes {dimension_semantics = [#tpu.dimension_semantics<parallel>, #tpu.dimension_semantics<parallel>], iteration_bounds = array<i64: 2, 2>, scalar_prefetch = 0 : i64, scratch_operands = 0 : i64, tpu.core_type = #tpu.core_type<tc>, window_params = [{transform_indices = @transform_0, window_bounds = array<i64: 1, 18, 24, 128>}, {pipeline_mode = #tpu.pipeline_mode<synchronous>, transform_indices = @transform_1, window_bounds = array<i64: 3, 3, 128, 128>}, {pipeline_mode = #tpu.pipeline_mode<synchronous>, transform_indices = @transform_2, window_bounds = array<i64: 1, 128>}, {transform_indices = @transform_3, window_bounds = array<i64: 1, 8, 16, 128>}]} {
    %c8_i32 = arith.constant 8 : i32
    %0 = arith.muli %arg1, %c8_i32 : i32
    %1 = tpu.assume_multiple %0, 8 : i32
    %c0 = arith.constant 0 : index
    %2 = arith.index_cast %1 : i32 to index
    %c0_0 = arith.constant 0 : index
    %c0_1 = arith.constant 0 : index
    %3 = vector.load %arg2[%c0, %2, %c0_0, %c0_1] : memref<1x18x24x128xbf16, #tpu.memory_space<vmem>>, vector<1x10x24x128xbf16>
    %4 = vector.shape_cast %3 : vector<1x10x24x128xbf16> to vector<10x24x128xbf16>
    %5 = vector.shape_cast %4 : vector<10x24x128xbf16> to vector<240x128xbf16>
    %6 = vector.extract_strided_slice %5 {offsets = [0, 0], sizes = [192, 128], strides = [1, 1]} : vector<240x128xbf16> to vector<192x128xbf16>
    %c0_2 = arith.constant 0 : index
    %c0_3 = arith.constant 0 : index
    %c0_4 = arith.constant 0 : index
    %c0_5 = arith.constant 0 : index
    %7 = vector.load %arg3[%c0_2, %c0_3, %c0_4, %c0_5] : memref<3x3x128x128xbf16, #tpu.memory_space<vmem>>, vector<1x1x128x128xbf16>
    %8 = vector.shape_cast %7 : vector<1x1x128x128xbf16> to vector<128x128xbf16>
    %cst = arith.constant dense<0.000000e+00> : vector<192x128xf32>
    %9 = tpu.matmul %6, %8, %cst {dimension_numbers = #tpu.dot_dimension_numbers<[1], [0], [0], [1], [0, 0, 1, 1], [], []>} : vector<192x128xbf16>, vector<128x128xbf16>, vector<192x128xf32> -> vector<192x128xf32>
    %10 = vector.extract_strided_slice %5 {offsets = [24, 0], sizes = [192, 128], strides = [1, 1]} : vector<240x128xbf16> to vector<192x128xbf16>
    %c1 = arith.constant 1 : index
    %c0_6 = arith.constant 0 : index
    %c0_7 = arith.constant 0 : index
    %c0_8 = arith.constant 0 : index
    %11 = vector.load %arg3[%c1, %c0_6, %c0_7, %c0_8] : memref<3x3x128x128xbf16, #tpu.memory_space<vmem>>, vector<1x1x128x128xbf16>
    %12 = vector.shape_cast %11 : vector<1x1x128x128xbf16> to vector<128x128xbf16>
    %cst_9 = arith.constant dense<0.000000e+00> : vector<192x128xf32>
    %13 = tpu.matmul %10, %12, %cst_9 {dimension_numbers = #tpu.dot_dimension_numbers<[1], [0], [0], [1], [0, 0, 1, 1], [], []>} : vector<192x128xbf16>, vector<128x128xbf16>, vector<192x128xf32> -> vector<192x128xf32>
    %14 = arith.addf %9, %13 : vector<192x128xf32>
    %15 = vector.extract_strided_slice %5 {offsets = [48, 0], sizes = [192, 128], strides = [1, 1]} : vector<240x128xbf16> to vector<192x128xbf16>
    %c2 = arith.constant 2 : index
    %c0_10 = arith.constant 0 : index
    %c0_11 = arith.constant 0 : index
    %c0_12 = arith.constant 0 : index
    %16 = vector.load %arg3[%c2, %c0_10, %c0_11, %c0_12] : memref<3x3x128x128xbf16, #tpu.memory_space<vmem>>, vector<1x1x128x128xbf16>
    %17 = vector.shape_cast %16 : vector<1x1x128x128xbf16> to vector<128x128xbf16>
    %cst_13 = arith.constant dense<0.000000e+00> : vector<192x128xf32>
    %18 = tpu.matmul %15, %17, %cst_13 {dimension_numbers = #tpu.dot_dimension_numbers<[1], [0], [0], [1], [0, 0, 1, 1], [], []>} : vector<192x128xbf16>, vector<128x128xbf16>, vector<192x128xf32> -> vector<192x128xf32>
    %19 = arith.addf %14, %18 : vector<192x128xf32>
    %20 = vector.extract_strided_slice %5 {offsets = [0, 0], sizes = [192, 128], strides = [1, 1]} : vector<240x128xbf16> to vector<192x128xbf16>
    %c0_14 = arith.constant 0 : index
    %c1_15 = arith.constant 1 : index
    %c0_16 = arith.constant 0 : index
    %c0_17 = arith.constant 0 : index
    %21 = vector.load %arg3[%c0_14, %c1_15, %c0_16, %c0_17] : memref<3x3x128x128xbf16, #tpu.memory_space<vmem>>, vector<1x1x128x128xbf16>
    %22 = vector.shape_cast %21 : vector<1x1x128x128xbf16> to vector<128x128xbf16>
    %cst_18 = arith.constant dense<0.000000e+00> : vector<192x128xf32>
    %23 = tpu.matmul %20, %22, %cst_18 {dimension_numbers = #tpu.dot_dimension_numbers<[1], [0], [0], [1], [0, 0, 1, 1], [], []>} : vector<192x128xbf16>, vector<128x128xbf16>, vector<192x128xf32> -> vector<192x128xf32>
    %24 = vector.extract_strided_slice %5 {offsets = [24, 0], sizes = [192, 128], strides = [1, 1]} : vector<240x128xbf16> to vector<192x128xbf16>
    %c1_19 = arith.constant 1 : index
    %c1_20 = arith.constant 1 : index
    %c0_21 = arith.constant 0 : index
    %c0_22 = arith.constant 0 : index
    %25 = vector.load %arg3[%c1_19, %c1_20, %c0_21, %c0_22] : memref<3x3x128x128xbf16, #tpu.memory_space<vmem>>, vector<1x1x128x128xbf16>
    %26 = vector.shape_cast %25 : vector<1x1x128x128xbf16> to vector<128x128xbf16>
    %cst_23 = arith.constant dense<0.000000e+00> : vector<192x128xf32>
    %27 = tpu.matmul %24, %26, %cst_23 {dimension_numbers = #tpu.dot_dimension_numbers<[1], [0], [0], [1], [0, 0, 1, 1], [], []>} : vector<192x128xbf16>, vector<128x128xbf16>, vector<192x128xf32> -> vector<192x128xf32>
    %28 = arith.addf %23, %27 : vector<192x128xf32>
    %29 = vector.extract_strided_slice %5 {offsets = [48, 0], sizes = [192, 128], strides = [1, 1]} : vector<240x128xbf16> to vector<192x128xbf16>
    %c2_24 = arith.constant 2 : index
    %c1_25 = arith.constant 1 : index
    %c0_26 = arith.constant 0 : index
    %c0_27 = arith.constant 0 : index
    %30 = vector.load %arg3[%c2_24, %c1_25, %c0_26, %c0_27] : memref<3x3x128x128xbf16, #tpu.memory_space<vmem>>, vector<1x1x128x128xbf16>
    %31 = vector.shape_cast %30 : vector<1x1x128x128xbf16> to vector<128x128xbf16>
    %cst_28 = arith.constant dense<0.000000e+00> : vector<192x128xf32>
    %32 = tpu.matmul %29, %31, %cst_28 {dimension_numbers = #tpu.dot_dimension_numbers<[1], [0], [0], [1], [0, 0, 1, 1], [], []>} : vector<192x128xbf16>, vector<128x128xbf16>, vector<192x128xf32> -> vector<192x128xf32>
    %33 = arith.addf %28, %32 : vector<192x128xf32>
    %c191_i32 = arith.constant 191 : i32
    %34 = tpu.dynamic_rotate %33 by %c191_i32 dim 0 : vector<192x128xf32>, i32 -> vector<192x128xf32>
    %35 = arith.addf %19, %34 : vector<192x128xf32>
    %36 = vector.extract_strided_slice %5 {offsets = [0, 0], sizes = [192, 128], strides = [1, 1]} : vector<240x128xbf16> to vector<192x128xbf16>
    %c0_29 = arith.constant 0 : index
    %c2_30 = arith.constant 2 : index
    %c0_31 = arith.constant 0 : index
    %c0_32 = arith.constant 0 : index
    %37 = vector.load %arg3[%c0_29, %c2_30, %c0_31, %c0_32] : memref<3x3x128x128xbf16, #tpu.memory_space<vmem>>, vector<1x1x128x128xbf16>
    %38 = vector.shape_cast %37 : vector<1x1x128x128xbf16> to vector<128x128xbf16>
    %cst_33 = arith.constant dense<0.000000e+00> : vector<192x128xf32>
    %39 = tpu.matmul %36, %38, %cst_33 {dimension_numbers = #tpu.dot_dimension_numbers<[1], [0], [0], [1], [0, 0, 1, 1], [], []>} : vector<192x128xbf16>, vector<128x128xbf16>, vector<192x128xf32> -> vector<192x128xf32>
    %40 = vector.extract_strided_slice %5 {offsets = [24, 0], sizes = [192, 128], strides = [1, 1]} : vector<240x128xbf16> to vector<192x128xbf16>
    %c1_34 = arith.constant 1 : index
    %c2_35 = arith.constant 2 : index
    %c0_36 = arith.constant 0 : index
    %c0_37 = arith.constant 0 : index
    %41 = vector.load %arg3[%c1_34, %c2_35, %c0_36, %c0_37] : memref<3x3x128x128xbf16, #tpu.memory_space<vmem>>, vector<1x1x128x128xbf16>
    %42 = vector.shape_cast %41 : vector<1x1x128x128xbf16> to vector<128x128xbf16>
    %cst_38 = arith.constant dense<0.000000e+00> : vector<192x128xf32>
    %43 = tpu.matmul %40, %42, %cst_38 {dimension_numbers = #tpu.dot_dimension_numbers<[1], [0], [0], [1], [0, 0, 1, 1], [], []>} : vector<192x128xbf16>, vector<128x128xbf16>, vector<192x128xf32> -> vector<192x128xf32>
    %44 = arith.addf %39, %43 : vector<192x128xf32>
    %45 = vector.extract_strided_slice %5 {offsets = [48, 0], sizes = [192, 128], strides = [1, 1]} : vector<240x128xbf16> to vector<192x128xbf16>
    %c2_39 = arith.constant 2 : index
    %c2_40 = arith.constant 2 : index
    %c0_41 = arith.constant 0 : index
    %c0_42 = arith.constant 0 : index
    %46 = vector.load %arg3[%c2_39, %c2_40, %c0_41, %c0_42] : memref<3x3x128x128xbf16, #tpu.memory_space<vmem>>, vector<1x1x128x128xbf16>
    %47 = vector.shape_cast %46 : vector<1x1x128x128xbf16> to vector<128x128xbf16>
    %cst_43 = arith.constant dense<0.000000e+00> : vector<192x128xf32>
    %48 = tpu.matmul %45, %47, %cst_43 {dimension_numbers = #tpu.dot_dimension_numbers<[1], [0], [0], [1], [0, 0, 1, 1], [], []>} : vector<192x128xbf16>, vector<128x128xbf16>, vector<192x128xf32> -> vector<192x128xf32>
    %49 = arith.addf %44, %48 : vector<192x128xf32>
    %c190_i32 = arith.constant 190 : i32
    %50 = tpu.dynamic_rotate %49 by %c190_i32 dim 0 : vector<192x128xf32>, i32 -> vector<192x128xf32>
    %51 = arith.addf %35, %50 : vector<192x128xf32>
    %c0_44 = arith.constant 0 : index
    %c0_45 = arith.constant 0 : index
    %52 = vector.load %arg4[%c0_44, %c0_45] : memref<1x128xf32, #tpu.memory_space<vmem>>, vector<1x128xf32>
    %53 = vector.broadcast %52 : vector<1x128xf32> to vector<192x128xf32>
    %54 = arith.addf %51, %53 : vector<192x128xf32>
    %cst_46 = arith.constant 0.000000e+00 : f32
    %55 = vector.broadcast %cst_46 : f32 to vector<192x128xf32>
    %56 = arith.maximumf %54, %55 : vector<192x128xf32>
    %57 = vector.shape_cast %56 : vector<192x128xf32> to vector<8x24x128xf32>
    %58 = vector.extract_strided_slice %57 {offsets = [0, 0, 0], sizes = [8, 16, 128], strides = [1, 1, 1]} : vector<8x24x128xf32> to vector<8x16x128xf32>
    %c0_47 = arith.constant 0 : index
    %c0_48 = arith.constant 0 : index
    %c0_49 = arith.constant 0 : index
    %c0_50 = arith.constant 0 : index
    %59 = vector.load %arg5[%c0_47, %c0_48, %c0_49, %c0_50] : memref<1x8x16x128xf32, #tpu.memory_space<vmem>>, vector<1x8x16x128xf32>
    %60 = vector.shape_cast %59 : vector<1x8x16x128xf32> to vector<8x16x128xf32>
    %61 = vector.shape_cast %58 : vector<8x16x128xf32> to vector<1x8x16x128xf32>
    tpu.vector_store %arg5[%c0_47, %c0_48, %c0_49, %c0_50], %61 {strides = array<i32>} : memref<1x8x16x128xf32, #tpu.memory_space<vmem>>, vector<1x8x16x128xf32>,
    return
  }
  func.func @transform_0(%arg0: i32, %arg1: i32) -> (i32, i32, i32, i32) {
    %c0_i32 = arith.constant 0 : i32
    %c0_i32_0 = arith.constant 0 : i32
    %c0_i32_1 = arith.constant 0 : i32
    %c0_i32_2 = arith.constant 0 : i32
    return %arg0, %c0_i32, %c0_i32_0, %c0_i32_1 : i32, i32, i32, i32
  }
  func.func @transform_1(%arg0: i32, %arg1: i32) -> (i32, i32, i32, i32) {
    %c0_i32 = arith.constant 0 : i32
    %c0_i32_0 = arith.constant 0 : i32
    %c0_i32_1 = arith.constant 0 : i32
    %c0_i32_2 = arith.constant 0 : i32
    %c0_i32_3 = arith.constant 0 : i32
    return %c0_i32, %c0_i32_0, %c0_i32_1, %c0_i32_2 : i32, i32, i32, i32
  }
  func.func @transform_2(%arg0: i32, %arg1: i32) -> (i32, i32) {
    %c0_i32 = arith.constant 0 : i32
    %c0_i32_0 = arith.constant 0 : i32
    %c0_i32_1 = arith.constant 0 : i32
    return %c0_i32, %c0_i32_0 : i32, i32
  }
  func.func @transform_3(%arg0: i32, %arg1: i32) -> (i32, i32, i32, i32) {
    %c0_i32 = arith.constant 0 : i32
    %c0_i32_0 = arith.constant 0 : i32
    %c0_i32_1 = arith.constant 0 : i32
    return %arg0, %arg1, %c0_i32, %c0_i32_0 : i32, i32, i32, i32
  }
}

</mosaic_0001>

<llo_original>
// kernel: tpu_custom_call.1
$region0: #{tpu_custom_call.1}
  #allocation0 [shape = 'u32[]', space=smem, size = 0x4, offset = 0x4, fixed_abs, tag = 'smem constant byte address 0x4 - core index']
  #allocation1 [shape = 'u32[72,128]{1,0:T(1,128)}', space=vmem, size = 0x9000, scoped, tag = 'internal scratch']
  %s0 = inlined_call_operand.hbm [shape: bf16[2,18,24,128], index: 0, kind: input, shape index: {}]
  %s1 = inlined_call_operand.hbm [shape: bf16[3,3,128,128], index: 1, kind: input, shape index: {}]
  %s2 = inlined_call_operand.vmem [shape: f32[1,128], index: 2, kind: input, shape index: {}]
  %s3 = inlined_call_operand.hbm [shape: f32[2,16,16,128], index: 3, kind: output, shape index: {}]
  %s4 = sld [smem:[#allocation0]]
  $region53: #{tpu_custom_call.1} parent=0
    _
  %s6 = ssub.s32 1, %s4
  %s7 = scalar_select 0, %s6, %s4
  $region1: #{tpu_custom_call.1} parent=0
    #allocation2 [shape = 'u8[221184]{0}', space=vmem, size = 0x36000, scoped, tag = 'input window, operand 0']
    #allocation3 [shape = 's32[2]{0}', space=sflag, size = 0x8, scoped, tag = 'scoped memory for tpu_custom_call.1']
    #allocation4 [shape = 's32[2]{0}', space=sflag, size = 0x8, scoped, tag = 'scoped memory for tpu_custom_call.1']
    #allocation5 [shape = 'u8[294912]{0}', space=vmem, size = 0x48000, scoped, tag = 'input window, operand 1, single buffered']
    #allocation6 [shape = 's32[1]{0}', space=sflag, size = 0x4, scoped, tag = 'scoped memory for tpu_custom_call.1']
    #allocation7 [shape = 'u8[131072]{0}', space=vmem, size = 0x20000, scoped, tag = 'output window, operand 0']
    %8 = vsyncpa [#allocation3], 0
    %s9 = scalar_lea.sflag [#allocation3], 1
    %10 = vsyncpa %s9, 0
    %11 = vsyncpa [#allocation6], 0
    %12 = vsyncpa [#allocation4], 0
    %s13 = scalar_lea.sflag [#allocation4], 1
    %14 = vsyncpa %s13, 0
    loop: start=0, step=1, limit=6
    $region2: #{tpu_custom_call.1} parent=1 // loop_pre_header
      _
    $region3: #{tpu_custom_call.1} parent=1 // loop_header
      %s16 = sphi 0, %s20
      %p17 = scmp.ge.s32.totalorder %s16, 6
      %s23 = sphi 0, %s35
      %s24 = sphi 0, %s31
      %s25 = sphi 0, %s23
      %s26 = sphi 0, %s24
      %s27 = sphi 0, %s25
      %s28 = sphi 0, %s26
      %s38 = sphi 0, %s40
      %s41 = sphi 0, %s38
      %s42 = sphi 0, %s41
      %s58 = sphi 0, %s42
      %s62 = sphi 0, %s62
      %s64 = sphi 0, %s62
      %s65 = sphi 0, %s64
      %s79 = sphi 0, %s65
      %s83 = sphi 0, %s83
      %s85 = sphi 0, %s83
      %s86 = sphi 0, %s85
      %s100 = sphi 0, %s86
      %s108 = sphi 0, %s110
      %s111 = sphi 0, %s108
      %s112 = sphi 0, %s111
      %s128 = sphi 0, %s112
    $region4: #{tpu_custom_call.1} parent=1 // loop_header_branch
      %19 = sbr.rel (%p17) target = $region8
    $region5: #{tpu_custom_call.1} parent=1 // loop_body
      %s21 = ssub.s32 %s16, 1
      %s22 = ssub.s32 %s16, 2
      %s29 = sadd.s32 1, %s24
      %p30 = scmp.ge.s32.totalorder %s29, 2
      %s31 = scalar_select %p30, 0, %s29
      %s32 = sadd.s32 1, %s23
      %s33 = scalar_select %p30, %s32, %s23
      %p34 = scmp.ge.s32.totalorder %s33, 2
      %s35 = scalar_select %p34, 0, %s33
      %s36 = ssub.s32 %s23, %s35
      %p37 = scmp.eq.s32.totalorder %s36, 0
      %s39 = sadd.s32 %s38, 1
      %s40 = scalar_select %p37, %s38, %s39
      %p43 = pneg %p37
      %p44 = scmp.eq.s32.totalorder %s16, 3
      %p45 = por %p43, %p44
      %p46 = scmp.ne.s32.totalorder %s38, %s41
      %p47 = scmp.eq.s32.totalorder %s16, 0
      %p48 = por %p46, %p47
      %p49 = scmp.ne.s32.totalorder %s38, %s41
      %p50 = scmp.eq.s32.totalorder %s21, 3
      %p51 = por %p49, %p50
      %p52 = scmp.ne.s32.totalorder %s41, %s42
      %p53 = scmp.eq.s32.totalorder %s21, 0
      %p54 = por %p52, %p53
      %p55 = scmp.ne.s32.totalorder %s41, %s42
      %p56 = scmp.eq.s32.totalorder %s22, 3
      %p57 = por %p55, %p56
      %p59 = scmp.ne.s32.totalorder %s42, %s58
      %p60 = scmp.eq.s32.totalorder %s22, 0
      %p61 = por %p59, %p60
      %s63 = sadd.s32 %s62, 1
      %p66 = scmp.eq.s32.totalorder %s16, 3
      %p67 = scmp.ne.s32.totalorder %s62, %s64
      %p68 = scmp.eq.s32.totalorder %s16, 0
      %p69 = por %p67, %p68
      %p70 = scmp.ne.s32.totalorder %s62, %s64
      %p71 = scmp.eq.s32.totalorder %s21, 3
      %p72 = por %p70, %p71
      %p73 = scmp.ne.s32.totalorder %s64, %s65
      %p74 = scmp.eq.s32.totalorder %s21, 0
      %p75 = por %p73, %p74
      %p76 = scmp.ne.s32.totalorder %s64, %s65
      %p77 = scmp.eq.s32.totalorder %s22, 3
      %p78 = por %p76, %p77
      %p80 = scmp.ne.s32.totalorder %s65, %s79
      %p81 = scmp.eq.s32.totalorder %s22, 0
      %p82 = por %p80, %p81
      %s84 = sadd.s32 %s83, 1
      %p87 = scmp.eq.s32.totalorder %s16, 3
      %p88 = scmp.ne.s32.totalorder %s83, %s85
      %p89 = scmp.eq.s32.totalorder %s16, 0
      %p90 = por %p88, %p89
      %p91 = scmp.ne.s32.totalorder %s83, %s85
      %p92 = scmp.eq.s32.totalorder %s21, 3
      %p93 = por %p91, %p92
      %p94 = scmp.ne.s32.totalorder %s85, %s86
      %p95 = scmp.eq.s32.totalorder %s21, 0
      %p96 = por %p94, %p95
      %p97 = scmp.ne.s32.totalorder %s85, %s86
      %p98 = scmp.eq.s32.totalorder %s22, 3
      %p99 = por %p97, %p98
      %p101 = scmp.ne.s32.totalorder %s86, %s100
      %p102 = scmp.eq.s32.totalorder %s22, 0
      %p103 = por %p101, %p102
      %s104 = ssub.s32 %s23, %s35
      %s105 = ssub.s32 %s24, %s31
      %s106 = sor.u32 %s104, %s105
      %p107 = scmp.eq.s32.totalorder %s106, 0
      %s109 = sadd.s32 %s108, 1
      %s110 = scalar_select %p107, %s108, %s109
      %p113 = pneg %p107
      %p114 = scmp.eq.s32.totalorder %s16, 3
      %p115 = por %p113, %p114
      %p116 = scmp.ne.s32.totalorder %s108, %s111
      %p117 = scmp.eq.s32.totalorder %s16, 0
      %p118 = por %p116, %p117
      %p119 = scmp.ne.s32.totalorder %s108, %s111
      %p120 = scmp.eq.s32.totalorder %s21, 3
      %p121 = por %p119, %p120
      %p122 = scmp.ne.s32.totalorder %s111, %s112
      %p123 = scmp.eq.s32.totalorder %s21, 0
      %p124 = por %p122, %p123
      %p125 = scmp.ne.s32.totalorder %s111, %s112
      %p126 = scmp.eq.s32.totalorder %s22, 3
      %p127 = por %p125, %p126
      %p129 = scmp.ne.s32.totalorder %s112, %s128
      %p130 = scmp.eq.s32.totalorder %s22, 0
      %p131 = por %p129, %p130
      %p132 = scmp.le.s32.totalorder 1, %s16
      %p133 = scmp.lt.s32.totalorder %s16, 5
      %p134 = pnand %p132, %p133
      %p135 = pneg %p134
      // Predicated region
      $region9: #{tpu_custom_call.1} parent=5 // pred_check
        _
      $region10: #{tpu_custom_call.1} parent=5 // pred_check_branch
        %137 = sbr.rel (%p134) target = $region12
      $region11: #{tpu_custom_call.1} parent=5 // pred_region
        %s138 = ssub.s32 %s16, 1
        // Predicated region
        $region13: #{tpu_custom_call.1} parent=11 // pred_check
          %p139 = pneg %p75
        $region14: #{tpu_custom_call.1} parent=11 // pred_check_branch
          %141 = sbr.rel (%p139) target = $region16
        $region15: #{tpu_custom_call.1} parent=11 // pred_region
          %143 = vsyncadd [#allocation6], 0
          %s144 = sshll.u32 %s1, 4
          %s145 = int_to_ptr.hbm [resolvable:$true] %s144
          %s146 = sshll.u32 [#allocation5], 4
          %s147 = int_to_ptr.vmem [resolvable:$true] %s146
          %152 = dma.hbm_to_vmem [thread:$0]  %s145, 9216, %s147, [#allocation6], 64, 64, 4
        $region16: #{tpu_custom_call.1} parent=11 // pred_fallthru
          _
        // Predicated region
        $region17: #{tpu_custom_call.1} parent=11 // pred_check
          %p153 = pneg %p96
        $region18: #{tpu_custom_call.1} parent=11 // pred_check_branch
          %155 = sbr.rel (%p153) target = $region20
        $region19: #{tpu_custom_call.1} parent=11 // pred_region
          _
        $region20: #{tpu_custom_call.1} parent=11 // pred_fallthru
          _
      $region12: #{tpu_custom_call.1} parent=5 // pred_fallthru
        _
      %p156 = scmp.lt.s32.totalorder %s16, 4
      // Predicated region
      $region21: #{tpu_custom_call.1} parent=5 // pred_check
        %p157 = pneg %p156
      $region22: #{tpu_custom_call.1} parent=5 // pred_check_branch
        %159 = sbr.rel (%p157) target = $region24
      $region23: #{tpu_custom_call.1} parent=5 // pred_region
        // Predicated region
        $region25: #{tpu_custom_call.1} parent=23 // pred_check
          %p160 = pneg %p48
        $region26: #{tpu_custom_call.1} parent=23 // pred_check_branch
          %162 = sbr.rel (%p160) target = $region28
        $region27: #{tpu_custom_call.1} parent=23 // pred_region
          %s163 = sand.u32 %s38, 1
          %s164 = scalar_lea.sflag [#allocation3], %s163
          %s165 = sand.u32 %s38, 1
          %s166 = smul.addr %s165, 216
          %s167 = scalar_lea.vmem [#allocation2], %s166
          %169 = vsyncadd %s164, 0
          %s170 = smul.addr %s23, 54
          %s171 = smul.addr %s170, 4
          %s172 = scalar_lea.hbm %s0, %s171
          %s173 = sshll.u32 %s172, 4
          %s174 = int_to_ptr.hbm [resolvable:$true] %s173
          %s175 = sshll.u32 %s167, 4
          %s176 = int_to_ptr.vmem [resolvable:$true] %s175
          %181 = dma.hbm_to_vmem [thread:$0]  %s174, 3456, %s176, %s164, 64, 64, 4
        $region28: #{tpu_custom_call.1} parent=23 // pred_fallthru
          _
      $region24: #{tpu_custom_call.1} parent=5 // pred_fallthru
        _
      %p182 = scmp.le.s32.totalorder 1, %s16
      %p183 = scmp.lt.s32.totalorder %s16, 5
      %p184 = pnand %p182, %p183
      %p185 = pneg %p184
      // Predicated region
      $region29: #{tpu_custom_call.1} parent=5 // pred_check
        _
      $region30: #{tpu_custom_call.1} parent=5 // pred_check_branch
        %187 = sbr.rel (%p184) target = $region32
      $region31: #{tpu_custom_call.1} parent=5 // pred_region
        %s188 = ssub.s32 %s16, 1
        %s189 = sand.u32 %s41, 1
        %s190 = scalar_lea.sflag [#allocation3], %s189
        %s191 = sand.u32 %s41, 1
        %s192 = smul.addr %s191, 216
        %s193 = scalar_lea.vmem [#allocation2], %s192
        // Predicated region
        $region33: #{tpu_custom_call.1} parent=31 // pred_check
          %p194 = pneg %p54
        $region34: #{tpu_custom_call.1} parent=31 // pred_check_branch
          %196 = sbr.rel (%p194) target = $region36
        $region35: #{tpu_custom_call.1} parent=31 // pred_region
          %198 = dma.done %s190, 3456
        $region36: #{tpu_custom_call.1} parent=31 // pred_fallthru
          _
        // Predicated region
        $region37: #{tpu_custom_call.1} parent=31 // pred_check
          %p199 = pneg %p75
        $region38: #{tpu_custom_call.1} parent=31 // pred_check_branch
          %201 = sbr.rel (%p199) target = $region40
        $region39: #{tpu_custom_call.1} parent=31 // pred_region
          %203 = dma.done [#allocation6], 9216
        $region40: #{tpu_custom_call.1} parent=31 // pred_fallthru
          _
        %s204 = sand.u32 %s41, 1
        %s205 = scalar_lea.sflag [#allocation3], %s204
        %s206 = sand.u32 %s41, 1
        %s207 = smul.addr %s206, 216
        %s208 = scalar_lea.vmem [#allocation2], %s207
        %p209 = pneg %p54
        %p210 = pneg %p51
        %p211 = pneg %p75
        %p212 = pneg %p72
        %p213 = pneg %p96
        %p214 = pneg %p93
        %p215 = pneg %p124
        %p216 = pneg %p121
        %s217 = sand.u32 %s111, 1
        %s218 = scalar_lea.sflag [#allocation4], %s217
        %s219 = sand.u32 %s111, 1
        %s220 = smul.addr %s219, 128
        %s221 = scalar_lea.vmem [#allocation7], %s220
        %s222 = smul.u32 8, %s26
        %s223 = smul.u32 %s26, 8
        %s224 = smul.u32 %s223, 3
        %s225 = smul.addr %s224, 4
        %s226 = scalar_lea.vmem %s193, %s225 [#allocation2]
        %v227 = vld [vmem:[%s226] sm:$0xf]
        %v228 = vld [vmem:[%s226 + $0x4] sm:$0xf]
        %v229 = vld [vmem:[%s226 + $0x8] sm:$0xf]
        %v230 = vld [vmem:[%s226 + $0xc] sm:$0xf]
        %v231 = vld [vmem:[%s226 + $0x10] sm:$0xf]
        %v232 = vld [vmem:[%s226 + $0x14] sm:$0xf]
        %v233 = vld [vmem:[%s226 + $0x18] sm:$0xf]
        %v234 = vld [vmem:[%s226 + $0x1c] sm:$0xf]
        %v235 = vld [vmem:[%s226 + $0x20] sm:$0xf]
        %v236 = vld [vmem:[%s226 + $0x24] sm:$0xf]
        %v237 = vld [vmem:[%s226 + $0x28] sm:$0xf]
        %v238 = vld [vmem:[%s226 + $0x2c] sm:$0xf]
        %v239 = vld [vmem:[%s226 + $0x30] sm:$0xf]
        %v240 = vld [vmem:[%s226 + $0x34] sm:$0xf]
        %v241 = vld [vmem:[%s226 + $0x38] sm:$0xf]
        %v242 = vld [vmem:[%s226 + $0x3c] sm:$0xf]
        %v243 = vld [vmem:[%s226 + $0x40] sm:$0xf]
        %v244 = vld [vmem:[%s226 + $0x44] sm:$0xf]
        %v245 = vld [vmem:[%s226 + $0x48] sm:$0xf]
        %v246 = vld [vmem:[%s226 + $0x4c] sm:$0xf]
        %v247 = vld [vmem:[%s226 + $0x50] sm:$0xf]
        %v248 = vld [vmem:[%s226 + $0x54] sm:$0xf]
        %v249 = vld [vmem:[%s226 + $0x58] sm:$0xf]
        %v250 = vld [vmem:[%s226 + $0x5c] sm:$0xf]
        %v251 = vld [vmem:[%s226 + $0x60] sm:$0xf]
        %v252 = vld [vmem:[%s226 + $0x64] sm:$0xf]
        %v253 = vld [vmem:[%s226 + $0x68] sm:$0xf]
        %v254 = vld [vmem:[%s226 + $0x6c] sm:$0xf]
        %v255 = vld [vmem:[%s226 + $0x70] sm:$0xf]
        %v256 = vld [vmem:[%s226 + $0x74] sm:$0xf]
        %v257 = vld [vmem:[#allocation5] sm:$0xf]
        %v258 = vld [vmem:[#allocation5 + $0x4] sm:$0xf]
        %v259 = vld [vmem:[#allocation5 + $0x8] sm:$0xf]
        %v260 = vld [vmem:[#allocation5 + $0xc] sm:$0xf]
        %v261 = vld [vmem:[#allocation5 + $0x10] sm:$0xf]
        %v262 = vld [vmem:[#allocation5 + $0x14] sm:$0xf]
        %v263 = vld [vmem:[#allocation5 + $0x18] sm:$0xf]
        %v264 = vld [vmem:[#allocation5 + $0x1c] sm:$0xf]
        %v265 = vld [vmem:[#allocation5 + $0x20] sm:$0xf]
        %v266 = vld [vmem:[#allocation5 + $0x24] sm:$0xf]
        %v267 = vld [vmem:[#allocation5 + $0x28] sm:$0xf]
        %v268 = vld [vmem:[#allocation5 + $0x2c] sm:$0xf]
        %v269 = vld [vmem:[#allocation5 + $0x30] sm:$0xf]
        %v270 = vld [vmem:[#allocation5 + $0x34] sm:$0xf]
        %v271 = vld [vmem:[#allocation5 + $0x38] sm:$0xf]
        %v272 = vld [vmem:[#allocation5 + $0x3c] sm:$0xf]
        %s273 = scalar_lea.vmem [#allocation5], 192
        %v274 = vld [vmem:[%s273] sm:$0xf]
        %v275 = vld [vmem:[%s273 + $0x4] sm:$0xf]
        %v276 = vld [vmem:[%s273 + $0x8] sm:$0xf]
        %v277 = vld [vmem:[%s273 + $0xc] sm:$0xf]
        %v278 = vld [vmem:[%s273 + $0x10] sm:$0xf]
        %v279 = vld [vmem:[%s273 + $0x14] sm:$0xf]
        %v280 = vld [vmem:[%s273 + $0x18] sm:$0xf]
        %v281 = vld [vmem:[%s273 + $0x1c] sm:$0xf]
        %v282 = vld [vmem:[%s273 + $0x20] sm:$0xf]
        %v283 = vld [vmem:[%s273 + $0x24] sm:$0xf]
        %v284 = vld [vmem:[%s273 + $0x28] sm:$0xf]
        %v285 = vld [vmem:[%s273 + $0x2c] sm:$0xf]
        %v286 = vld [vmem:[%s273 + $0x30] sm:$0xf]
        %v287 = vld [vmem:[%s273 + $0x34] sm:$0xf]
        %v288 = vld [vmem:[%s273 + $0x38] sm:$0xf]
        %v289 = vld [vmem:[%s273 + $0x3c] sm:$0xf]
        %v314 = vunpack.c.l.b16 %v230
        %v315 = vunpack.c.l.b16 %v231
        %v316 = vunpack.c.l.b16 %v232
        %v317 = vunpack.c.l.b16 %v233
        %v318 = vunpack.c.l.b16 %v234
        %v319 = vunpack.c.l.b16 %v235
        %v320 = vunpack.c.l.b16 %v236
        %v321 = vunpack.c.l.b16 %v237
        %v322 = vunpack.c.l.b16 %v238
        %v323 = vunpack.c.l.b16 %v239
        %v324 = vunpack.c.l.b16 %v240
        %v325 = vunpack.c.l.b16 %v241
        %v326 = vunpack.c.l.b16 %v242
        %v327 = vunpack.c.l.b16 %v243
        %v328 = vunpack.c.l.b16 %v244
        %v329 = vunpack.c.l.b16 %v245
        %v330 = vunpack.c.l.b16 %v246
        %v331 = vunpack.c.l.b16 %v247
        %v332 = vunpack.c.l.b16 %v248
        %v333 = vunpack.c.l.b16 %v249
        %v334 = vunpack.c.l.b16 %v250
        %v335 = vunpack.c.l.b16 %v251
        %v336 = vunpack.c.l.b16 %v252
        %v337 = vunpack.c.l.b16 %v253
        %v338 = vpack.c.b16 %v315, %v314
        %v339 = vpack.c.b16 %v317, %v316
        %v340 = vpack.c.b16 %v319, %v318
        %v341 = vpack.c.b16 %v321, %v320
        %v342 = vpack.c.b16 %v323, %v322
        %v343 = vpack.c.b16 %v325, %v324
        %v344 = vpack.c.b16 %v327, %v326
        %v345 = vpack.c.b16 %v329, %v328
        %v346 = vpack.c.b16 %v331, %v330
        %v347 = vpack.c.b16 %v333, %v332
        %v348 = vpack.c.b16 %v335, %v334
        %v349 = vpack.c.b16 %v337, %v336
        %v378 = vunpack.c.l.b16 %v274
        %v379 = vunpack.c.l.b16 %v275
        %v380 = vunpack.c.l.b16 %v276
        %v381 = vunpack.c.l.b16 %v277
        %v382 = vunpack.c.l.b16 %v278
        %v383 = vunpack.c.l.b16 %v279
        %v384 = vunpack.c.l.b16 %v280
        %v385 = vunpack.c.l.b16 %v281
        %v386 = vunpack.c.l.b16 %v282
        %v387 = vunpack.c.l.b16 %v283
        %v388 = vunpack.c.l.b16 %v284
        %v389 = vunpack.c.l.b16 %v285
        %v390 = vunpack.c.l.b16 %v286
        %v391 = vunpack.c.l.b16 %v287
        %v392 = vunpack.c.l.b16 %v288
        %v393 = vunpack.c.l.b16 %v289
        %v394 = vpack.c.b16 %v379, %v378
        %v395 = vpack.c.b16 %v381, %v380
        %v396 = vpack.c.b16 %v383, %v382
        %v397 = vpack.c.b16 %v385, %v384
        %v398 = vpack.c.b16 %v387, %v386
        %v399 = vpack.c.b16 %v389, %v388
        %v400 = vpack.c.b16 %v391, %v390
        %v401 = vpack.c.b16 %v393, %v392
        %410 = vmatpush.bf16.msra.mxu0 %v401
        %411 = vmatpush.bf16.msra.mxu0 %v400
        %412 = vmatpush.bf16.msra.mxu0 %v399
        %413 = vmatpush.bf16.msra.mxu0 %v398
        %414 = vmatpush.bf16.msra.mxu0 %v397
        %415 = vmatpush.bf16.msra.mxu0 %v396
        %416 = vmatpush.bf16.msra.mxu0 %v395
        %417 = vmatpush.bf16.msra.mxu0 %v394
        %418 = vmatmul.bf16.gmra.mxu0 %v338
        %v419 = vpop.f32.mrf.mxu0
        %v420 = vadd.f32 0.0, %v419
        %v421 = vpop.f32.mrf.mxu0
        %v422 = vadd.f32 0.0, %v421
        %423 = vmatmul.bf16.gmra.mxu0 %v339
        %v424 = vpop.f32.mrf.mxu0
        %v425 = vpop.f32.mrf.mxu0
        %v426 = vadd.f32 0.0, %v425
        %427 = vmatmul.bf16.gmra.mxu0 %v340
        %v428 = vpop.f32.mrf.mxu0
        %v429 = vadd.f32 0.0, %v428
        %v430 = vpop.f32.mrf.mxu0
        %431 = vmatmul.bf16.gmra.mxu0 %v341
        %v432 = vpop.f32.mrf.mxu0
        %v433 = vadd.f32 0.0, %v432
        %v434 = vpop.f32.mrf.mxu0
        %v435 = vadd.f32 0.0, %v434
        %436 = vmatmul.bf16.gmra.mxu0 %v342
        %v437 = vpop.f32.mrf.mxu0
        %v438 = vpop.f32.mrf.mxu0
        %v439 = vadd.f32 0.0, %v438
        %440 = vmatmul.bf16.gmra.mxu0 %v343
        %v441 = vpop.f32.mrf.mxu0
        %v442 = vadd.f32 0.0, %v441
        %v443 = vpop.f32.mrf.mxu0
        %444 = vmatmul.bf16.gmra.mxu0 %v344
        %v445 = vpop.f32.mrf.mxu0
        %v446 = vadd.f32 0.0, %v445
        %v447 = vpop.f32.mrf.mxu0
        %v448 = vadd.f32 0.0, %v447
        %449 = vmatmul.bf16.gmra.mxu0 %v345
        %v450 = vpop.f32.mrf.mxu0
        %v451 = vpop.f32.mrf.mxu0
        %v452 = vadd.f32 0.0, %v451
        %453 = vmatmul.bf16.gmra.mxu0 %v346
        %v454 = vpop.f32.mrf.mxu0
        %v455 = vadd.f32 0.0, %v454
        %v456 = vpop.f32.mrf.mxu0
        %457 = vmatmul.bf16.gmra.mxu0 %v347
        %v458 = vpop.f32.mrf.mxu0
        %v459 = vadd.f32 0.0, %v458
        %v460 = vpop.f32.mrf.mxu0
        %v461 = vadd.f32 0.0, %v460
        %462 = vmatmul.bf16.gmra.mxu0 %v348
        %v463 = vpop.f32.mrf.mxu0
        %v464 = vpop.f32.mrf.mxu0
        %v465 = vadd.f32 0.0, %v464
        %466 = vmatmul.bf16.gmra.mxu0 %v349
        %v467 = vpop.f32.mrf.mxu0
        %v468 = vadd.f32 0.0, %v467
        %v469 = vpop.f32.mrf.mxu0
        %470 = vdwg.mxu0
        %v474 = vunpack.c.l.b16 %v227
        %v475 = vunpack.c.l.b16 %v228
        %v476 = vunpack.c.l.b16 %v229
        %v477 = vpack.c.b16 %v475, %v474
        %v478 = vpack.c.b16 %v314, %v476
        %v479 = vpack.c.b16 %v316, %v315
        %v480 = vpack.c.b16 %v318, %v317
        %v481 = vpack.c.b16 %v320, %v319
        %v482 = vpack.c.b16 %v322, %v321
        %v483 = vpack.c.b16 %v324, %v323
        %v484 = vpack.c.b16 %v326, %v325
        %v485 = vpack.c.b16 %v328, %v327
        %v486 = vpack.c.b16 %v330, %v329
        %v487 = vpack.c.b16 %v332, %v331
        %v488 = vpack.c.b16 %v334, %v333
        %v517 = vunpack.c.l.b16 %v257
        %v518 = vunpack.c.l.b16 %v258
        %v519 = vunpack.c.l.b16 %v259
        %v520 = vunpack.c.l.b16 %v260
        %v521 = vunpack.c.l.b16 %v261
        %v522 = vunpack.c.l.b16 %v262
        %v523 = vunpack.c.l.b16 %v263
        %v524 = vunpack.c.l.b16 %v264
        %v525 = vunpack.c.l.b16 %v265
        %v526 = vunpack.c.l.b16 %v266
        %v527 = vunpack.c.l.b16 %v267
        %v528 = vunpack.c.l.b16 %v268
        %v529 = vunpack.c.l.b16 %v269
        %v530 = vunpack.c.l.b16 %v270
        %v531 = vunpack.c.l.b16 %v271
        %v532 = vunpack.c.l.b16 %v272
        %v533 = vpack.c.b16 %v518, %v517
        %v534 = vpack.c.b16 %v520, %v519
        %v535 = vpack.c.b16 %v522, %v521
        %v536 = vpack.c.b16 %v524, %v523
        %v537 = vpack.c.b16 %v526, %v525
        %v538 = vpack.c.b16 %v528, %v527
        %v539 = vpack.c.b16 %v530, %v529
        %v540 = vpack.c.b16 %v532, %v531
        %549 = vmatpush.bf16.msra.mxu0 %v540
        %550 = vmatpush.bf16.msra.mxu0 %v539
        %551 = vmatpush.bf16.msra.mxu0 %v538
        %552 = vmatpush.bf16.msra.mxu0 %v537
        %553 = vmatpush.bf16.msra.mxu0 %v536
        %554 = vmatpush.bf16.msra.mxu0 %v535
        %555 = vmatpush.bf16.msra.mxu0 %v534
        %556 = vmatpush.bf16.msra.mxu0 %v533
        %557 = vmatmul.bf16.gmra.mxu0 %v477
        %v558 = vpop.f32.mrf.mxu0
        %v559 = vadd.f32 %v420, %v558
        %v560 = vpop.f32.mrf.mxu0
        %v561 = vadd.f32 %v422, %v560
        %562 = vmatmul.bf16.gmra.mxu0 %v478
        %v563 = vpop.f32.mrf.mxu0
        %v564 = vpop.f32.mrf.mxu0
        %v565 = vadd.f32 %v426, %v564
        %566 = vmatmul.bf16.gmra.mxu0 %v479
        %v567 = vpop.f32.mrf.mxu0
        %v568 = vadd.f32 %v429, %v567
        %v569 = vpop.f32.mrf.mxu0
        %570 = vmatmul.bf16.gmra.mxu0 %v480
        %v571 = vpop.f32.mrf.mxu0
        %v572 = vadd.f32 %v433, %v571
        %v573 = vpop.f32.mrf.mxu0
        %v574 = vadd.f32 %v435, %v573
        %575 = vmatmul.bf16.gmra.mxu0 %v481
        %v576 = vpop.f32.mrf.mxu0
        %v577 = vpop.f32.mrf.mxu0
        %v578 = vadd.f32 %v439, %v577
        %579 = vmatmul.bf16.gmra.mxu0 %v482
        %v580 = vpop.f32.mrf.mxu0
        %v581 = vadd.f32 %v442, %v580
        %v582 = vpop.f32.mrf.mxu0
        %583 = vmatmul.bf16.gmra.mxu0 %v483
        %v584 = vpop.f32.mrf.mxu0
        %v585 = vadd.f32 %v446, %v584
        %v586 = vpop.f32.mrf.mxu0
        %v587 = vadd.f32 %v448, %v586
        %588 = vmatmul.bf16.gmra.mxu0 %v484
        %v589 = vpop.f32.mrf.mxu0
        %v590 = vpop.f32.mrf.mxu0
        %v591 = vadd.f32 %v452, %v590
        %592 = vmatmul.bf16.gmra.mxu0 %v485
        %v593 = vpop.f32.mrf.mxu0
        %v594 = vadd.f32 %v455, %v593
        %v595 = vpop.f32.mrf.mxu0
        %596 = vmatmul.bf16.gmra.mxu0 %v486
        %v597 = vpop.f32.mrf.mxu0
        %v598 = vadd.f32 %v459, %v597
        %v599 = vpop.f32.mrf.mxu0
        %v600 = vadd.f32 %v461, %v599
        %601 = vmatmul.bf16.gmra.mxu0 %v487
        %v602 = vpop.f32.mrf.mxu0
        %v603 = vpop.f32.mrf.mxu0
        %v604 = vadd.f32 %v465, %v603
        %605 = vmatmul.bf16.gmra.mxu0 %v488
        %v606 = vpop.f32.mrf.mxu0
        %v607 = vadd.f32 %v468, %v606
        %v608 = vpop.f32.mrf.mxu0
        %609 = vdwg.mxu0
        %s610 = scalar_lea.vmem [#allocation5], 384
        %v611 = vld [vmem:[%s610] sm:$0xf]
        %v612 = vld [vmem:[%s610 + $0x4] sm:$0xf]
        %v613 = vld [vmem:[%s610 + $0x8] sm:$0xf]
        %v614 = vld [vmem:[%s610 + $0xc] sm:$0xf]
        %v615 = vld [vmem:[%s610 + $0x10] sm:$0xf]
        %v616 = vld [vmem:[%s610 + $0x14] sm:$0xf]
        %v617 = vld [vmem:[%s610 + $0x18] sm:$0xf]
        %v618 = vld [vmem:[%s610 + $0x1c] sm:$0xf]
        %v619 = vld [vmem:[%s610 + $0x20] sm:$0xf]
        %v620 = vld [vmem:[%s610 + $0x24] sm:$0xf]
        %v621 = vld [vmem:[%s610 + $0x28] sm:$0xf]
        %v622 = vld [vmem:[%s610 + $0x2c] sm:$0xf]
        %v623 = vld [vmem:[%s610 + $0x30] sm:$0xf]
        %v624 = vld [vmem:[%s610 + $0x34] sm:$0xf]
        %v625 = vld [vmem:[%s610 + $0x38] sm:$0xf]
        %v626 = vld [vmem:[%s610 + $0x3c] sm:$0xf]
        %v630 = vunpack.c.l.b16 %v254
        %v631 = vunpack.c.l.b16 %v255
        %v632 = vunpack.c.l.b16 %v256
        %v633 = vpack.c.b16 %v336, %v335
        %v634 = vpack.c.b16 %v630, %v337
        %v635 = vpack.c.b16 %v632, %v631
        %v655 = vunpack.c.l.b16 %v611
        %v656 = vunpack.c.l.b16 %v612
        %v657 = vunpack.c.l.b16 %v613
        %v658 = vunpack.c.l.b16 %v614
        %v659 = vunpack.c.l.b16 %v615
        %v660 = vunpack.c.l.b16 %v616
        %v661 = vunpack.c.l.b16 %v617
        %v662 = vunpack.c.l.b16 %v618
        %v663 = vunpack.c.l.b16 %v619
        %v664 = vunpack.c.l.b16 %v620
        %v665 = vunpack.c.l.b16 %v621
        %v666 = vunpack.c.l.b16 %v622
        %v667 = vunpack.c.l.b16 %v623
        %v668 = vunpack.c.l.b16 %v624
        %v669 = vunpack.c.l.b16 %v625
        %v670 = vunpack.c.l.b16 %v626
        %v671 = vpack.c.b16 %v656, %v655
        %v672 = vpack.c.b16 %v658, %v657
        %v673 = vpack.c.b16 %v660, %v659
        %v674 = vpack.c.b16 %v662, %v661
        %v675 = vpack.c.b16 %v664, %v663
        %v676 = vpack.c.b16 %v666, %v665
        %v677 = vpack.c.b16 %v668, %v667
        %v678 = vpack.c.b16 %v670, %v669
        %687 = vmatpush.bf16.msra.mxu0 %v678
        %688 = vmatpush.bf16.msra.mxu0 %v677
        %689 = vmatpush.bf16.msra.mxu0 %v676
        %690 = vmatpush.bf16.msra.mxu0 %v675
        %691 = vmatpush.bf16.msra.mxu0 %v674
        %692 = vmatpush.bf16.msra.mxu0 %v673
        %693 = vmatpush.bf16.msra.mxu0 %v672
        %694 = vmatpush.bf16.msra.mxu0 %v671
        %695 = vmatmul.bf16.gmra.mxu0 %v480
        %v696 = vpop.f32.mrf.mxu0
        %v697 = vadd.f32 0.0, %v696
        %v698 = vpop.f32.mrf.mxu0
        %v699 = vadd.f32 0.0, %v698
        %700 = vmatmul.bf16.gmra.mxu0 %v481
        %v701 = vpop.f32.mrf.mxu0
        %v702 = vpop.f32.mrf.mxu0
        %v703 = vadd.f32 0.0, %v702
        %704 = vmatmul.bf16.gmra.mxu0 %v482
        %v705 = vpop.f32.mrf.mxu0
        %v706 = vadd.f32 0.0, %v705
        %v707 = vpop.f32.mrf.mxu0
        %708 = vmatmul.bf16.gmra.mxu0 %v483
        %v709 = vpop.f32.mrf.mxu0
        %v710 = vadd.f32 0.0, %v709
        %v711 = vpop.f32.mrf.mxu0
        %v712 = vadd.f32 0.0, %v711
        %713 = vmatmul.bf16.gmra.mxu0 %v484
        %v714 = vpop.f32.mrf.mxu0
        %v715 = vpop.f32.mrf.mxu0
        %v716 = vadd.f32 0.0, %v715
        %717 = vmatmul.bf16.gmra.mxu0 %v485
        %v718 = vpop.f32.mrf.mxu0
        %v719 = vadd.f32 0.0, %v718
        %v720 = vpop.f32.mrf.mxu0
        %721 = vmatmul.bf16.gmra.mxu0 %v486
        %v722 = vpop.f32.mrf.mxu0
        %v723 = vadd.f32 0.0, %v722
        %v724 = vpop.f32.mrf.mxu0
        %v725 = vadd.f32 0.0, %v724
        %726 = vmatmul.bf16.gmra.mxu0 %v487
        %v727 = vpop.f32.mrf.mxu0
        %v728 = vpop.f32.mrf.mxu0
        %v729 = vadd.f32 0.0, %v728
        %730 = vmatmul.bf16.gmra.mxu0 %v488
        %v731 = vpop.f32.mrf.mxu0
        %v732 = vadd.f32 0.0, %v731
        %v733 = vpop.f32.mrf.mxu0
        %734 = vmatmul.bf16.gmra.mxu0 %v633
        %v735 = vpop.f32.mrf.mxu0
        %v736 = vadd.f32 0.0, %v735
        %v737 = vpop.f32.mrf.mxu0
        %v738 = vadd.f32 0.0, %v737
        %739 = vmatmul.bf16.gmra.mxu0 %v634
        %v740 = vpop.f32.mrf.mxu0
        %v741 = vpop.f32.mrf.mxu0
        %v742 = vadd.f32 0.0, %v741
        %743 = vmatmul.bf16.gmra.mxu0 %v635
        %v744 = vpop.f32.mrf.mxu0
        %v745 = vadd.f32 0.0, %v744
        %v746 = vpop.f32.mrf.mxu0
        %747 = vdwg.mxu0
        %v748 = vadd.f32 %v559, %v697
        %v749 = vadd.f32 %v561, %v699
        %v750 = vadd.f32 %v565, %v703
        %v751 = vadd.f32 %v568, %v706
        %v752 = vadd.f32 %v572, %v710
        %v753 = vadd.f32 %v574, %v712
        %v754 = vadd.f32 %v578, %v716
        %v755 = vadd.f32 %v581, %v719
        %v756 = vadd.f32 %v585, %v723
        %v757 = vadd.f32 %v587, %v725
        %v758 = vadd.f32 %v591, %v729
        %v759 = vadd.f32 %v594, %v732
        %v760 = vadd.f32 %v598, %v736
        %v761 = vadd.f32 %v600, %v738
        %v762 = vadd.f32 %v604, %v742
        %v763 = vadd.f32 %v607, %v745
        %s764 = scalar_lea.vmem [#allocation5], 64
        %v765 = vld [vmem:[%s764] sm:$0xf]
        %v766 = vld [vmem:[%s764 + $0x4] sm:$0xf]
        %v767 = vld [vmem:[%s764 + $0x8] sm:$0xf]
        %v768 = vld [vmem:[%s764 + $0xc] sm:$0xf]
        %v769 = vld [vmem:[%s764 + $0x10] sm:$0xf]
        %v770 = vld [vmem:[%s764 + $0x14] sm:$0xf]
        %v771 = vld [vmem:[%s764 + $0x18] sm:$0xf]
        %v772 = vld [vmem:[%s764 + $0x1c] sm:$0xf]
        %v773 = vld [vmem:[%s764 + $0x20] sm:$0xf]
        %v774 = vld [vmem:[%s764 + $0x24] sm:$0xf]
        %v775 = vld [vmem:[%s764 + $0x28] sm:$0xf]
        %v776 = vld [vmem:[%s764 + $0x2c] sm:$0xf]
        %v777 = vld [vmem:[%s764 + $0x30] sm:$0xf]
        %v778 = vld [vmem:[%s764 + $0x34] sm:$0xf]
        %v779 = vld [vmem:[%s764 + $0x38] sm:$0xf]
        %v780 = vld [vmem:[%s764 + $0x3c] sm:$0xf]
        %s781 = scalar_lea.vmem [#allocation5], 256
        %v782 = vld [vmem:[%s781] sm:$0xf]
        %v783 = vld [vmem:[%s781 + $0x4] sm:$0xf]
        %v784 = vld [vmem:[%s781 + $0x8] sm:$0xf]
        %v785 = vld [vmem:[%s781 + $0xc] sm:$0xf]
        %v786 = vld [vmem:[%s781 + $0x10] sm:$0xf]
        %v787 = vld [vmem:[%s781 + $0x14] sm:$0xf]
        %v788 = vld [vmem:[%s781 + $0x18] sm:$0xf]
        %v789 = vld [vmem:[%s781 + $0x1c] sm:$0xf]
        %v790 = vld [vmem:[%s781 + $0x20] sm:$0xf]
        %v791 = vld [vmem:[%s781 + $0x24] sm:$0xf]
        %v792 = vld [vmem:[%s781 + $0x28] sm:$0xf]
        %v793 = vld [vmem:[%s781 + $0x2c] sm:$0xf]
        %v794 = vld [vmem:[%s781 + $0x30] sm:$0xf]
        %v795 = vld [vmem:[%s781 + $0x34] sm:$0xf]
        %v796 = vld [vmem:[%s781 + $0x38] sm:$0xf]
        %v797 = vld [vmem:[%s781 + $0x3c] sm:$0xf]
        %v814 = vunpack.c.l.b16 %v782
        %v815 = vunpack.c.l.b16 %v783
        %v816 = vunpack.c.l.b16 %v784
        %v817 = vunpack.c.l.b16 %v785
        %v818 = vunpack.c.l.b16 %v786
        %v819 = vunpack.c.l.b16 %v787
        %v820 = vunpack.c.l.b16 %v788
        %v821 = vunpack.c.l.b16 %v789
        %v822 = vunpack.c.l.b16 %v790
        %v823 = vunpack.c.l.b16 %v791
        %v824 = vunpack.c.l.b16 %v792
        %v825 = vunpack.c.l.b16 %v793
        %v826 = vunpack.c.l.b16 %v794
        %v827 = vunpack.c.l.b16 %v795
        %v828 = vunpack.c.l.b16 %v796
        %v829 = vunpack.c.l.b16 %v797
        %v830 = vpack.c.b16 %v815, %v814
        %v831 = vpack.c.b16 %v817, %v816
        %v832 = vpack.c.b16 %v819, %v818
        %v833 = vpack.c.b16 %v821, %v820
        %v834 = vpack.c.b16 %v823, %v822
        %v835 = vpack.c.b16 %v825, %v824
        %v836 = vpack.c.b16 %v827, %v826
        %v837 = vpack.c.b16 %v829, %v828
        %846 = vmatpush.bf16.msra.mxu0 %v837
        %847 = vmatpush.bf16.msra.mxu0 %v836
        %848 = vmatpush.bf16.msra.mxu0 %v835
        %849 = vmatpush.bf16.msra.mxu0 %v834
        %850 = vmatpush.bf16.msra.mxu0 %v833
        %851 = vmatpush.bf16.msra.mxu0 %v832
        %852 = vmatpush.bf16.msra.mxu0 %v831
        %853 = vmatpush.bf16.msra.mxu0 %v830
        %854 = vmatmul.bf16.gmra.mxu0 %v338
        %v855 = vpop.f32.mrf.mxu0
        %v856 = vadd.f32 0.0, %v855
        %v857 = vpop.f32.mrf.mxu0
        %v858 = vadd.f32 0.0, %v857
        %859 = vmatmul.bf16.gmra.mxu0 %v339
        %v860 = vpop.f32.mrf.mxu0
        %v861 = vadd.f32 0.0, %v860
        %v862 = vpop.f32.mrf.mxu0
        %v863 = vadd.f32 0.0, %v862
        %864 = vmatmul.bf16.gmra.mxu0 %v340
        %v865 = vpop.f32.mrf.mxu0
        %v866 = vadd.f32 0.0, %v865
        %v867 = vpop.f32.mrf.mxu0
        %v868 = vadd.f32 0.0, %v867
        %869 = vmatmul.bf16.gmra.mxu0 %v341
        %v870 = vpop.f32.mrf.mxu0
        %v871 = vadd.f32 0.0, %v870
        %v872 = vpop.f32.mrf.mxu0
        %v873 = vadd.f32 0.0, %v872
        %874 = vmatmul.bf16.gmra.mxu0 %v342
        %v875 = vpop.f32.mrf.mxu0
        %v876 = vadd.f32 0.0, %v875
        %v877 = vpop.f32.mrf.mxu0
        %v878 = vadd.f32 0.0, %v877
        %879 = vmatmul.bf16.gmra.mxu0 %v343
        %v880 = vpop.f32.mrf.mxu0
        %v881 = vadd.f32 0.0, %v880
        %v882 = vpop.f32.mrf.mxu0
        %v883 = vadd.f32 0.0, %v882
        %884 = vmatmul.bf16.gmra.mxu0 %v344
        %v885 = vpop.f32.mrf.mxu0
        %v886 = vadd.f32 0.0, %v885
        %v887 = vpop.f32.mrf.mxu0
        %v888 = vadd.f32 0.0, %v887
        %889 = vmatmul.bf16.gmra.mxu0 %v345
        %v890 = vpop.f32.mrf.mxu0
        %v891 = vadd.f32 0.0, %v890
        %v892 = vpop.f32.mrf.mxu0
        %v893 = vadd.f32 0.0, %v892
        %894 = vmatmul.bf16.gmra.mxu0 %v346
        %v895 = vpop.f32.mrf.mxu0
        %v896 = vadd.f32 0.0, %v895
        %v897 = vpop.f32.mrf.mxu0
        %v898 = vadd.f32 0.0, %v897
        %899 = vmatmul.bf16.gmra.mxu0 %v347
        %v900 = vpop.f32.mrf.mxu0
        %v901 = vadd.f32 0.0, %v900
        %v902 = vpop.f32.mrf.mxu0
        %v903 = vadd.f32 0.0, %v902
        %904 = vmatmul.bf16.gmra.mxu0 %v348
        %v905 = vpop.f32.mrf.mxu0
        %v906 = vadd.f32 0.0, %v905
        %v907 = vpop.f32.mrf.mxu0
        %v908 = vadd.f32 0.0, %v907
        %909 = vmatmul.bf16.gmra.mxu0 %v349
        %v910 = vpop.f32.mrf.mxu0
        %v911 = vadd.f32 0.0, %v910
        %v912 = vpop.f32.mrf.mxu0
        %v913 = vadd.f32 0.0, %v912
        %914 = vdwg.mxu0
        %v931 = vunpack.c.l.b16 %v765
        %v932 = vunpack.c.l.b16 %v766
        %v933 = vunpack.c.l.b16 %v767
        %v934 = vunpack.c.l.b16 %v768
        %v935 = vunpack.c.l.b16 %v769
        %v936 = vunpack.c.l.b16 %v770
        %v937 = vunpack.c.l.b16 %v771
        %v938 = vunpack.c.l.b16 %v772
        %v939 = vunpack.c.l.b16 %v773
        %v940 = vunpack.c.l.b16 %v774
        %v941 = vunpack.c.l.b16 %v775
        %v942 = vunpack.c.l.b16 %v776
        %v943 = vunpack.c.l.b16 %v777
        %v944 = vunpack.c.l.b16 %v778
        %v945 = vunpack.c.l.b16 %v779
        %v946 = vunpack.c.l.b16 %v780
        %v947 = vpack.c.b16 %v932, %v931
        %v948 = vpack.c.b16 %v934, %v933
        %v949 = vpack.c.b16 %v936, %v935
        %v950 = vpack.c.b16 %v938, %v937
        %v951 = vpack.c.b16 %v940, %v939
        %v952 = vpack.c.b16 %v942, %v941
        %v953 = vpack.c.b16 %v944, %v943
        %v954 = vpack.c.b16 %v946, %v945
        %963 = vmatpush.bf16.msra.mxu0 %v954
        %964 = vmatpush.bf16.msra.mxu0 %v953
        %965 = vmatpush.bf16.msra.mxu0 %v952
        %966 = vmatpush.bf16.msra.mxu0 %v951
        %967 = vmatpush.bf16.msra.mxu0 %v950
        %968 = vmatpush.bf16.msra.mxu0 %v949
        %969 = vmatpush.bf16.msra.mxu0 %v948
        %970 = vmatpush.bf16.msra.mxu0 %v947
        %971 = vmatmul.bf16.gmra.mxu0 %v477
        %v972 = vpop.f32.mrf.mxu0
        %v973 = vadd.f32 %v856, %v972
        %v974 = vpop.f32.mrf.mxu0
        %v975 = vadd.f32 %v858, %v974
        %976 = vmatmul.bf16.gmra.mxu0 %v478
        %v977 = vpop.f32.mrf.mxu0
        %v978 = vadd.f32 %v861, %v977
        %v979 = vpop.f32.mrf.mxu0
        %v980 = vadd.f32 %v863, %v979
        %981 = vmatmul.bf16.gmra.mxu0 %v479
        %v982 = vpop.f32.mrf.mxu0
        %v983 = vadd.f32 %v866, %v982
        %v984 = vpop.f32.mrf.mxu0
        %v985 = vadd.f32 %v868, %v984
        %986 = vmatmul.bf16.gmra.mxu0 %v480
        %v987 = vpop.f32.mrf.mxu0
        %v988 = vadd.f32 %v871, %v987
        %v989 = vpop.f32.mrf.mxu0
        %v990 = vadd.f32 %v873, %v989
        %991 = vmatmul.bf16.gmra.mxu0 %v481
        %v992 = vpop.f32.mrf.mxu0
        %v993 = vadd.f32 %v876, %v992
        %v994 = vpop.f32.mrf.mxu0
        %v995 = vadd.f32 %v878, %v994
        %996 = vmatmul.bf16.gmra.mxu0 %v482
        %v997 = vpop.f32.mrf.mxu0
        %v998 = vadd.f32 %v881, %v997
        %v999 = vpop.f32.mrf.mxu0
        %v1000 = vadd.f32 %v883, %v999
        %1001 = vmatmul.bf16.gmra.mxu0 %v483
        %v1002 = vpop.f32.mrf.mxu0
        %v1003 = vadd.f32 %v886, %v1002
        %v1004 = vpop.f32.mrf.mxu0
        %v1005 = vadd.f32 %v888, %v1004
        %1006 = vmatmul.bf16.gmra.mxu0 %v484
        %v1007 = vpop.f32.mrf.mxu0
        %v1008 = vadd.f32 %v891, %v1007
        %v1009 = vpop.f32.mrf.mxu0
        %v1010 = vadd.f32 %v893, %v1009
        %1011 = vmatmul.bf16.gmra.mxu0 %v485
        %v1012 = vpop.f32.mrf.mxu0
        %v1013 = vadd.f32 %v896, %v1012
        %v1014 = vpop.f32.mrf.mxu0
        %v1015 = vadd.f32 %v898, %v1014
        %1016 = vmatmul.bf16.gmra.mxu0 %v486
        %v1017 = vpop.f32.mrf.mxu0
        %v1018 = vadd.f32 %v901, %v1017
        %v1019 = vpop.f32.mrf.mxu0
        %v1020 = vadd.f32 %v903, %v1019
        %1021 = vmatmul.bf16.gmra.mxu0 %v487
        %v1022 = vpop.f32.mrf.mxu0
        %v1023 = vadd.f32 %v906, %v1022
        %v1024 = vpop.f32.mrf.mxu0
        %v1025 = vadd.f32 %v908, %v1024
        %1026 = vmatmul.bf16.gmra.mxu0 %v488
        %v1027 = vpop.f32.mrf.mxu0
        %v1028 = vadd.f32 %v911, %v1027
        %v1029 = vpop.f32.mrf.mxu0
        %v1030 = vadd.f32 %v913, %v1029
        %1031 = vdwg.mxu0
        %s1032 = scalar_lea.vmem [#allocation5], 448
        %v1033 = vld [vmem:[%s1032] sm:$0xf]
        %v1034 = vld [vmem:[%s1032 + $0x4] sm:$0xf]
        %v1035 = vld [vmem:[%s1032 + $0x8] sm:$0xf]
        %v1036 = vld [vmem:[%s1032 + $0xc] sm:$0xf]
        %v1037 = vld [vmem:[%s1032 + $0x10] sm:$0xf]
        %v1038 = vld [vmem:[%s1032 + $0x14] sm:$0xf]
        %v1039 = vld [vmem:[%s1032 + $0x18] sm:$0xf]
        %v1040 = vld [vmem:[%s1032 + $0x1c] sm:$0xf]
        %v1041 = vld [vmem:[%s1032 + $0x20] sm:$0xf]
        %v1042 = vld [vmem:[%s1032 + $0x24] sm:$0xf]
        %v1043 = vld [vmem:[%s1032 + $0x28] sm:$0xf]
        %v1044 = vld [vmem:[%s1032 + $0x2c] sm:$0xf]
        %v1045 = vld [vmem:[%s1032 + $0x30] sm:$0xf]
        %v1046 = vld [vmem:[%s1032 + $0x34] sm:$0xf]
        %v1047 = vld [vmem:[%s1032 + $0x38] sm:$0xf]
        %v1048 = vld [vmem:[%s1032 + $0x3c] sm:$0xf]
        %v1065 = vunpack.c.l.b16 %v1033
        %v1066 = vunpack.c.l.b16 %v1034
        %v1067 = vunpack.c.l.b16 %v1035
        %v1068 = vunpack.c.l.b16 %v1036
        %v1069 = vunpack.c.l.b16 %v1037
        %v1070 = vunpack.c.l.b16 %v1038
        %v1071 = vunpack.c.l.b16 %v1039
        %v1072 = vunpack.c.l.b16 %v1040
        %v1073 = vunpack.c.l.b16 %v1041
        %v1074 = vunpack.c.l.b16 %v1042
        %v1075 = vunpack.c.l.b16 %v1043
        %v1076 = vunpack.c.l.b16 %v1044
        %v1077 = vunpack.c.l.b16 %v1045
        %v1078 = vunpack.c.l.b16 %v1046
        %v1079 = vunpack.c.l.b16 %v1047
        %v1080 = vunpack.c.l.b16 %v1048
        %v1081 = vpack.c.b16 %v1066, %v1065
        %v1082 = vpack.c.b16 %v1068, %v1067
        %v1083 = vpack.c.b16 %v1070, %v1069
        %v1084 = vpack.c.b16 %v1072, %v1071
        %v1085 = vpack.c.b16 %v1074, %v1073
        %v1086 = vpack.c.b16 %v1076, %v1075
        %v1087 = vpack.c.b16 %v1078, %v1077
        %v1088 = vpack.c.b16 %v1080, %v1079
        %1097 = vmatpush.bf16.msra.mxu0 %v1088
        %1098 = vmatpush.bf16.msra.mxu0 %v1087
        %1099 = vmatpush.bf16.msra.mxu0 %v1086
        %1100 = vmatpush.bf16.msra.mxu0 %v1085
        %1101 = vmatpush.bf16.msra.mxu0 %v1084
        %1102 = vmatpush.bf16.msra.mxu0 %v1083
        %1103 = vmatpush.bf16.msra.mxu0 %v1082
        %1104 = vmatpush.bf16.msra.mxu0 %v1081
        %1105 = vmatmul.bf16.gmra.mxu0 %v480
        %v1106 = vpop.f32.mrf.mxu0
        %v1107 = vadd.f32 0.0, %v1106
        %v1108 = vpop.f32.mrf.mxu0
        %v1109 = vadd.f32 0.0, %v1108
        %1110 = vmatmul.bf16.gmra.mxu0 %v481
        %v1111 = vpop.f32.mrf.mxu0
        %v1112 = vadd.f32 0.0, %v1111
        %v1113 = vpop.f32.mrf.mxu0
        %v1114 = vadd.f32 0.0, %v1113
        %1115 = vmatmul.bf16.gmra.mxu0 %v482
        %v1116 = vpop.f32.mrf.mxu0
        %v1117 = vadd.f32 0.0, %v1116
        %v1118 = vpop.f32.mrf.mxu0
        %v1119 = vadd.f32 0.0, %v1118
        %1120 = vmatmul.bf16.gmra.mxu0 %v483
        %v1121 = vpop.f32.mrf.mxu0
        %v1122 = vadd.f32 0.0, %v1121
        %v1123 = vpop.f32.mrf.mxu0
        %v1124 = vadd.f32 0.0, %v1123
        %1125 = vmatmul.bf16.gmra.mxu0 %v484
        %v1126 = vpop.f32.mrf.mxu0
        %v1127 = vadd.f32 0.0, %v1126
        %v1128 = vpop.f32.mrf.mxu0
        %v1129 = vadd.f32 0.0, %v1128
        %1130 = vmatmul.bf16.gmra.mxu0 %v485
        %v1131 = vpop.f32.mrf.mxu0
        %v1132 = vadd.f32 0.0, %v1131
        %v1133 = vpop.f32.mrf.mxu0
        %v1134 = vadd.f32 0.0, %v1133
        %1135 = vmatmul.bf16.gmra.mxu0 %v486
        %v1136 = vpop.f32.mrf.mxu0
        %v1137 = vadd.f32 0.0, %v1136
        %v1138 = vpop.f32.mrf.mxu0
        %v1139 = vadd.f32 0.0, %v1138
        %1140 = vmatmul.bf16.gmra.mxu0 %v487
        %v1141 = vpop.f32.mrf.mxu0
        %v1142 = vadd.f32 0.0, %v1141
        %v1143 = vpop.f32.mrf.mxu0
        %v1144 = vadd.f32 0.0, %v1143
        %1145 = vmatmul.bf16.gmra.mxu0 %v488
        %v1146 = vpop.f32.mrf.mxu0
        %v1147 = vadd.f32 0.0, %v1146
        %v1148 = vpop.f32.mrf.mxu0
        %v1149 = vadd.f32 0.0, %v1148
        %1150 = vmatmul.bf16.gmra.mxu0 %v633
        %v1151 = vpop.f32.mrf.mxu0
        %v1152 = vadd.f32 0.0, %v1151
        %v1153 = vpop.f32.mrf.mxu0
        %v1154 = vadd.f32 0.0, %v1153
        %1155 = vmatmul.bf16.gmra.mxu0 %v634
        %v1156 = vpop.f32.mrf.mxu0
        %v1157 = vadd.f32 0.0, %v1156
        %v1158 = vpop.f32.mrf.mxu0
        %v1159 = vadd.f32 0.0, %v1158
        %1160 = vmatmul.bf16.gmra.mxu0 %v635
        %v1161 = vpop.f32.mrf.mxu0
        %v1162 = vadd.f32 0.0, %v1161
        %v1163 = vpop.f32.mrf.mxu0
        %v1164 = vadd.f32 0.0, %v1163
        %1165 = vdwg.mxu0
        %v1166 = vadd.f32 %v973, %v1107
        %v1167 = vadd.f32 %v975, %v1109
        %v1168 = vadd.f32 %v978, %v1112
        %v1169 = vadd.f32 %v980, %v1114
        %v1170 = vadd.f32 %v983, %v1117
        %v1171 = vadd.f32 %v985, %v1119
        %v1172 = vadd.f32 %v988, %v1122
        %v1173 = vadd.f32 %v990, %v1124
        %v1174 = vadd.f32 %v993, %v1127
        %v1175 = vadd.f32 %v995, %v1129
        %v1176 = vadd.f32 %v998, %v1132
        %v1177 = vadd.f32 %v1000, %v1134
        %v1178 = vadd.f32 %v1003, %v1137
        %v1179 = vadd.f32 %v1005, %v1139
        %v1180 = vadd.f32 %v1008, %v1142
        %v1181 = vadd.f32 %v1010, %v1144
        %v1182 = vadd.f32 %v1013, %v1147
        %v1183 = vadd.f32 %v1015, %v1149
        %v1184 = vadd.f32 %v1018, %v1152
        %v1185 = vadd.f32 %v1020, %v1154
        %v1186 = vadd.f32 %v1023, %v1157
        %v1187 = vadd.f32 %v1025, %v1159
        %v1188 = vadd.f32 %v1028, %v1162
        %v1189 = vadd.f32 %v1030, %v1164
        %v1190 = vrot.slane %v1166, 1
        %v1191 = vrot.slane %v1167, 1
        %v1192 = vrot.slane %v1168, 1
        %v1193 = vrot.slane %v1169, 1
        %v1194 = vrot.slane %v1170, 1
        %v1195 = vrot.slane %v1171, 1
        %v1196 = vrot.slane %v1172, 1
        %v1197 = vrot.slane %v1173, 1
        %v1198 = vrot.slane %v1174, 1
        %v1199 = vrot.slane %v1175, 1
        %v1200 = vrot.slane %v1176, 1
        %v1201 = vrot.slane %v1177, 1
        %v1202 = vrot.slane %v1178, 1
        %v1203 = vrot.slane %v1179, 1
        %v1204 = vrot.slane %v1180, 1
        %v1205 = vrot.slane %v1181, 1
        %v1206 = vrot.slane %v1182, 1
        %v1207 = vrot.slane %v1183, 1
        %v1208 = vrot.slane %v1184, 1
        %v1209 = vrot.slane %v1185, 1
        %v1210 = vrot.slane %v1186, 1
        %v1211 = vrot.slane %v1187, 1
        %v1212 = vrot.slane %v1188, 1
        %v1213 = vrot.slane %v1189, 1
        %v1214 = vlaneseq
        %v1215 = vshrl.u32 %v1214, 7
        %vm1216 = vcmp.lt.s32.totalorder %v1215, 7
        %v1217 = vsel %vm1216, %v1212, %v1213
        %v1218 = vsel %vm1216, %v1211, %v1212
        %v1219 = vsel %vm1216, %v1209, %v1210
        %v1220 = vsel %vm1216, %v1208, %v1209
        %v1221 = vsel %vm1216, %v1206, %v1207
        %v1222 = vsel %vm1216, %v1205, %v1206
        %v1223 = vsel %vm1216, %v1203, %v1204
        %v1224 = vsel %vm1216, %v1202, %v1203
        %v1225 = vsel %vm1216, %v1200, %v1201
        %v1226 = vsel %vm1216, %v1199, %v1200
        %v1227 = vsel %vm1216, %v1197, %v1198
        %v1228 = vsel %vm1216, %v1196, %v1197
        %v1229 = vsel %vm1216, %v1194, %v1195
        %v1230 = vsel %vm1216, %v1193, %v1194
        %v1231 = vsel %vm1216, %v1191, %v1192
        %v1232 = vsel %vm1216, %v1190, %v1191
        %v1233 = vadd.f32 %v748, %v1232
        %v1234 = vadd.f32 %v749, %v1231
        %v1235 = vadd.f32 %v750, %v1230
        %v1236 = vadd.f32 %v751, %v1229
        %v1237 = vadd.f32 %v752, %v1228
        %v1238 = vadd.f32 %v753, %v1227
        %v1239 = vadd.f32 %v754, %v1226
        %v1240 = vadd.f32 %v755, %v1225
        %v1241 = vadd.f32 %v756, %v1224
        %v1242 = vadd.f32 %v757, %v1223
        %v1243 = vadd.f32 %v758, %v1222
        %v1244 = vadd.f32 %v759, %v1221
        %v1245 = vadd.f32 %v760, %v1220
        %v1246 = vadd.f32 %v761, %v1219
        %v1247 = vadd.f32 %v762, %v1218
        %v1248 = vadd.f32 %v763, %v1217
        %s1249 = scalar_lea.vmem [#allocation5], 128
        %v1250 = vld [vmem:[%s1249] sm:$0xf]
        %v1251 = vld [vmem:[%s1249 + $0x4] sm:$0xf]
        %v1252 = vld [vmem:[%s1249 + $0x8] sm:$0xf]
        %v1253 = vld [vmem:[%s1249 + $0xc] sm:$0xf]
        %v1254 = vld [vmem:[%s1249 + $0x10] sm:$0xf]
        %v1255 = vld [vmem:[%s1249 + $0x14] sm:$0xf]
        %v1256 = vld [vmem:[%s1249 + $0x18] sm:$0xf]
        %v1257 = vld [vmem:[%s1249 + $0x1c] sm:$0xf]
        %v1258 = vld [vmem:[%s1249 + $0x20] sm:$0xf]
        %v1259 = vld [vmem:[%s1249 + $0x24] sm:$0xf]
        %v1260 = vld [vmem:[%s1249 + $0x28] sm:$0xf]
        %v1261 = vld [vmem:[%s1249 + $0x2c] sm:$0xf]
        %v1262 = vld [vmem:[%s1249 + $0x30] sm:$0xf]
        %v1263 = vld [vmem:[%s1249 + $0x34] sm:$0xf]
        %v1264 = vld [vmem:[%s1249 + $0x38] sm:$0xf]
        %v1265 = vld [vmem:[%s1249 + $0x3c] sm:$0xf]
        %s1266 = scalar_lea.vmem [#allocation5], 320
        %v1267 = vld [vmem:[%s1266] sm:$0xf]
        %v1268 = vld [vmem:[%s1266 + $0x4] sm:$0xf]
        %v1269 = vld [vmem:[%s1266 + $0x8] sm:$0xf]
        %v1270 = vld [vmem:[%s1266 + $0xc] sm:$0xf]
        %v1271 = vld [vmem:[%s1266 + $0x10] sm:$0xf]
        %v1272 = vld [vmem:[%s1266 + $0x14] sm:$0xf]
        %v1273 = vld [vmem:[%s1266 + $0x18] sm:$0xf]
        %v1274 = vld [vmem:[%s1266 + $0x1c] sm:$0xf]
        %v1275 = vld [vmem:[%s1266 + $0x20] sm:$0xf]
        %v1276 = vld [vmem:[%s1266 + $0x24] sm:$0xf]
        %v1277 = vld [vmem:[%s1266 + $0x28] sm:$0xf]
        %v1278 = vld [vmem:[%s1266 + $0x2c] sm:$0xf]
        %v1279 = vld [vmem:[%s1266 + $0x30] sm:$0xf]
        %v1280 = vld [vmem:[%s1266 + $0x34] sm:$0xf]
        %v1281 = vld [vmem:[%s1266 + $0x38] sm:$0xf]
        %v1282 = vld [vmem:[%s1266 + $0x3c] sm:$0xf]
        %v1299 = vunpack.c.l.b16 %v1267
        %v1300 = vunpack.c.l.b16 %v1268
        %v1301 = vunpack.c.l.b16 %v1269
        %v1302 = vunpack.c.l.b16 %v1270
        %v1303 = vunpack.c.l.b16 %v1271
        %v1304 = vunpack.c.l.b16 %v1272
        %v1305 = vunpack.c.l.b16 %v1273
        %v1306 = vunpack.c.l.b16 %v1274
        %v1307 = vunpack.c.l.b16 %v1275
        %v1308 = vunpack.c.l.b16 %v1276
        %v1309 = vunpack.c.l.b16 %v1277
        %v1310 = vunpack.c.l.b16 %v1278
        %v1311 = vunpack.c.l.b16 %v1279
        %v1312 = vunpack.c.l.b16 %v1280
        %v1313 = vunpack.c.l.b16 %v1281
        %v1314 = vunpack.c.l.b16 %v1282
        %v1315 = vpack.c.b16 %v1300, %v1299
        %v1316 = vpack.c.b16 %v1302, %v1301
        %v1317 = vpack.c.b16 %v1304, %v1303
        %v1318 = vpack.c.b16 %v1306, %v1305
        %v1319 = vpack.c.b16 %v1308, %v1307
        %v1320 = vpack.c.b16 %v1310, %v1309
        %v1321 = vpack.c.b16 %v1312, %v1311
        %v1322 = vpack.c.b16 %v1314, %v1313
        %1331 = vmatpush.bf16.msra.mxu0 %v1322
        %1332 = vmatpush.bf16.msra.mxu0 %v1321
        %1333 = vmatpush.bf16.msra.mxu0 %v1320
        %1334 = vmatpush.bf16.msra.mxu0 %v1319
        %1335 = vmatpush.bf16.msra.mxu0 %v1318
        %1336 = vmatpush.bf16.msra.mxu0 %v1317
        %1337 = vmatpush.bf16.msra.mxu0 %v1316
        %1338 = vmatpush.bf16.msra.mxu0 %v1315
        %1339 = vmatmul.bf16.gmra.mxu0 %v338
        %v1340 = vpop.f32.mrf.mxu0
        %v1341 = vadd.f32 0.0, %v1340
        %v1342 = vpop.f32.mrf.mxu0
        %v1343 = vadd.f32 0.0, %v1342
        %1344 = vmatmul.bf16.gmra.mxu0 %v339
        %v1345 = vpop.f32.mrf.mxu0
        %v1346 = vadd.f32 0.0, %v1345
        %v1347 = vpop.f32.mrf.mxu0
        %v1348 = vadd.f32 0.0, %v1347
        %1349 = vmatmul.bf16.gmra.mxu0 %v340
        %v1350 = vpop.f32.mrf.mxu0
        %v1351 = vadd.f32 0.0, %v1350
        %v1352 = vpop.f32.mrf.mxu0
        %v1353 = vadd.f32 0.0, %v1352
        %1354 = vmatmul.bf16.gmra.mxu0 %v341
        %v1355 = vpop.f32.mrf.mxu0
        %v1356 = vadd.f32 0.0, %v1355
        %v1357 = vpop.f32.mrf.mxu0
        %v1358 = vadd.f32 0.0, %v1357
        %1359 = vmatmul.bf16.gmra.mxu0 %v342
        %v1360 = vpop.f32.mrf.mxu0
        %v1361 = vadd.f32 0.0, %v1360
        %v1362 = vpop.f32.mrf.mxu0
        %v1363 = vadd.f32 0.0, %v1362
        %1364 = vmatmul.bf16.gmra.mxu0 %v343
        %v1365 = vpop.f32.mrf.mxu0
        %v1366 = vadd.f32 0.0, %v1365
        %v1367 = vpop.f32.mrf.mxu0
        %v1368 = vadd.f32 0.0, %v1367
        %1369 = vmatmul.bf16.gmra.mxu0 %v344
        %v1370 = vpop.f32.mrf.mxu0
        %v1371 = vadd.f32 0.0, %v1370
        %v1372 = vpop.f32.mrf.mxu0
        %v1373 = vadd.f32 0.0, %v1372
        %1374 = vmatmul.bf16.gmra.mxu0 %v345
        %v1375 = vpop.f32.mrf.mxu0
        %v1376 = vadd.f32 0.0, %v1375
        %v1377 = vpop.f32.mrf.mxu0
        %v1378 = vadd.f32 0.0, %v1377
        %1379 = vmatmul.bf16.gmra.mxu0 %v346
        %v1380 = vpop.f32.mrf.mxu0
        %v1381 = vadd.f32 0.0, %v1380
        %v1382 = vpop.f32.mrf.mxu0
        %v1383 = vadd.f32 0.0, %v1382
        %1384 = vmatmul.bf16.gmra.mxu0 %v347
        %v1385 = vpop.f32.mrf.mxu0
        %v1386 = vadd.f32 0.0, %v1385
        %v1387 = vpop.f32.mrf.mxu0
        %v1388 = vadd.f32 0.0, %v1387
        %1389 = vmatmul.bf16.gmra.mxu0 %v348
        %v1390 = vpop.f32.mrf.mxu0
        %v1391 = vadd.f32 0.0, %v1390
        %v1392 = vpop.f32.mrf.mxu0
        %v1393 = vadd.f32 0.0, %v1392
        %1394 = vmatmul.bf16.gmra.mxu0 %v349
        %v1395 = vpop.f32.mrf.mxu0
        %v1396 = vadd.f32 0.0, %v1395
        %v1397 = vpop.f32.mrf.mxu0
        %v1398 = vadd.f32 0.0, %v1397
        %1399 = vdwg.mxu0
        %v1416 = vunpack.c.l.b16 %v1250
        %v1417 = vunpack.c.l.b16 %v1251
        %v1418 = vunpack.c.l.b16 %v1252
        %v1419 = vunpack.c.l.b16 %v1253
        %v1420 = vunpack.c.l.b16 %v1254
        %v1421 = vunpack.c.l.b16 %v1255
        %v1422 = vunpack.c.l.b16 %v1256
        %v1423 = vunpack.c.l.b16 %v1257
        %v1424 = vunpack.c.l.b16 %v1258
        %v1425 = vunpack.c.l.b16 %v1259
        %v1426 = vunpack.c.l.b16 %v1260
        %v1427 = vunpack.c.l.b16 %v1261
        %v1428 = vunpack.c.l.b16 %v1262
        %v1429 = vunpack.c.l.b16 %v1263
        %v1430 = vunpack.c.l.b16 %v1264
        %v1431 = vunpack.c.l.b16 %v1265
        %v1432 = vpack.c.b16 %v1417, %v1416
        %v1433 = vpack.c.b16 %v1419, %v1418
        %v1434 = vpack.c.b16 %v1421, %v1420
        %v1435 = vpack.c.b16 %v1423, %v1422
        %v1436 = vpack.c.b16 %v1425, %v1424
        %v1437 = vpack.c.b16 %v1427, %v1426
        %v1438 = vpack.c.b16 %v1429, %v1428
        %v1439 = vpack.c.b16 %v1431, %v1430
        %1448 = vmatpush.bf16.msra.mxu0 %v1439
        %1449 = vmatpush.bf16.msra.mxu0 %v1438
        %1450 = vmatpush.bf16.msra.mxu0 %v1437
        %1451 = vmatpush.bf16.msra.mxu0 %v1436
        %1452 = vmatpush.bf16.msra.mxu0 %v1435
        %1453 = vmatpush.bf16.msra.mxu0 %v1434
        %1454 = vmatpush.bf16.msra.mxu0 %v1433
        %1455 = vmatpush.bf16.msra.mxu0 %v1432
        %1456 = vmatmul.bf16.gmra.mxu0 %v477
        %v1457 = vpop.f32.mrf.mxu0
        %v1458 = vadd.f32 %v1341, %v1457
        %v1459 = vpop.f32.mrf.mxu0
        %v1460 = vadd.f32 %v1343, %v1459
        %1461 = vmatmul.bf16.gmra.mxu0 %v478
        %v1462 = vpop.f32.mrf.mxu0
        %v1463 = vadd.f32 %v1346, %v1462
        %v1464 = vpop.f32.mrf.mxu0
        %v1465 = vadd.f32 %v1348, %v1464
        %1466 = vmatmul.bf16.gmra.mxu0 %v479
        %v1467 = vpop.f32.mrf.mxu0
        %v1468 = vadd.f32 %v1351, %v1467
        %v1469 = vpop.f32.mrf.mxu0
        %v1470 = vadd.f32 %v1353, %v1469
        %1471 = vmatmul.bf16.gmra.mxu0 %v480
        %v1472 = vpop.f32.mrf.mxu0
        %v1473 = vadd.f32 %v1356, %v1472
        %v1474 = vpop.f32.mrf.mxu0
        %v1475 = vadd.f32 %v1358, %v1474
        %1476 = vmatmul.bf16.gmra.mxu0 %v481
        %v1477 = vpop.f32.mrf.mxu0
        %v1478 = vadd.f32 %v1361, %v1477
        %v1479 = vpop.f32.mrf.mxu0
        %v1480 = vadd.f32 %v1363, %v1479
        %1481 = vmatmul.bf16.gmra.mxu0 %v482
        %v1482 = vpop.f32.mrf.mxu0
        %v1483 = vadd.f32 %v1366, %v1482
        %v1484 = vpop.f32.mrf.mxu0
        %v1485 = vadd.f32 %v1368, %v1484
        %1486 = vmatmul.bf16.gmra.mxu0 %v483
        %v1487 = vpop.f32.mrf.mxu0
        %v1488 = vadd.f32 %v1371, %v1487
        %v1489 = vpop.f32.mrf.mxu0
        %v1490 = vadd.f32 %v1373, %v1489
        %1491 = vmatmul.bf16.gmra.mxu0 %v484
        %v1492 = vpop.f32.mrf.mxu0
        %v1493 = vadd.f32 %v1376, %v1492
        %v1494 = vpop.f32.mrf.mxu0
        %v1495 = vadd.f32 %v1378, %v1494
        %1496 = vmatmul.bf16.gmra.mxu0 %v485
        %v1497 = vpop.f32.mrf.mxu0
        %v1498 = vadd.f32 %v1381, %v1497
        %v1499 = vpop.f32.mrf.mxu0
        %v1500 = vadd.f32 %v1383, %v1499
        %1501 = vmatmul.bf16.gmra.mxu0 %v486
        %v1502 = vpop.f32.mrf.mxu0
        %v1503 = vadd.f32 %v1386, %v1502
        %v1504 = vpop.f32.mrf.mxu0
        %v1505 = vadd.f32 %v1388, %v1504
        %1506 = vmatmul.bf16.gmra.mxu0 %v487
        %v1507 = vpop.f32.mrf.mxu0
        %v1508 = vadd.f32 %v1391, %v1507
        %v1509 = vpop.f32.mrf.mxu0
        %v1510 = vadd.f32 %v1393, %v1509
        %1511 = vmatmul.bf16.gmra.mxu0 %v488
        %v1512 = vpop.f32.mrf.mxu0
        %v1513 = vadd.f32 %v1396, %v1512
        %v1514 = vpop.f32.mrf.mxu0
        %v1515 = vadd.f32 %v1398, %v1514
        %1516 = vdwg.mxu0
        %s1517 = scalar_lea.vmem [#allocation5], 512
        %v1518 = vld [vmem:[%s1517] sm:$0xf]
        %v1519 = vld [vmem:[%s1517 + $0x4] sm:$0xf]
        %v1520 = vld [vmem:[%s1517 + $0x8] sm:$0xf]
        %v1521 = vld [vmem:[%s1517 + $0xc] sm:$0xf]
        %v1522 = vld [vmem:[%s1517 + $0x10] sm:$0xf]
        %v1523 = vld [vmem:[%s1517 + $0x14] sm:$0xf]
        %v1524 = vld [vmem:[%s1517 + $0x18] sm:$0xf]
        %v1525 = vld [vmem:[%s1517 + $0x1c] sm:$0xf]
        %v1526 = vld [vmem:[%s1517 + $0x20] sm:$0xf]
        %v1527 = vld [vmem:[%s1517 + $0x24] sm:$0xf]
        %v1528 = vld [vmem:[%s1517 + $0x28] sm:$0xf]
        %v1529 = vld [vmem:[%s1517 + $0x2c] sm:$0xf]
        %v1530 = vld [vmem:[%s1517 + $0x30] sm:$0xf]
        %v1531 = vld [vmem:[%s1517 + $0x34] sm:$0xf]
        %v1532 = vld [vmem:[%s1517 + $0x38] sm:$0xf]
        %v1533 = vld [vmem:[%s1517 + $0x3c] sm:$0xf]
        %v1550 = vunpack.c.l.b16 %v1518
        %v1551 = vunpack.c.l.b16 %v1519
        %v1552 = vunpack.c.l.b16 %v1520
        %v1553 = vunpack.c.l.b16 %v1521
        %v1554 = vunpack.c.l.b16 %v1522
        %v1555 = vunpack.c.l.b16 %v1523
        %v1556 = vunpack.c.l.b16 %v1524
        %v1557 = vunpack.c.l.b16 %v1525
        %v1558 = vunpack.c.l.b16 %v1526
        %v1559 = vunpack.c.l.b16 %v1527
        %v1560 = vunpack.c.l.b16 %v1528
        %v1561 = vunpack.c.l.b16 %v1529
        %v1562 = vunpack.c.l.b16 %v1530
        %v1563 = vunpack.c.l.b16 %v1531
        %v1564 = vunpack.c.l.b16 %v1532
        %v1565 = vunpack.c.l.b16 %v1533
        %v1566 = vpack.c.b16 %v1551, %v1550
        %v1567 = vpack.c.b16 %v1553, %v1552
        %v1568 = vpack.c.b16 %v1555, %v1554
        %v1569 = vpack.c.b16 %v1557, %v1556
        %v1570 = vpack.c.b16 %v1559, %v1558
        %v1571 = vpack.c.b16 %v1561, %v1560
        %v1572 = vpack.c.b16 %v1563, %v1562
        %v1573 = vpack.c.b16 %v1565, %v1564
        %1582 = vmatpush.bf16.msra.mxu0 %v1573
        %1583 = vmatpush.bf16.msra.mxu0 %v1572
        %1584 = vmatpush.bf16.msra.mxu0 %v1571
        %1585 = vmatpush.bf16.msra.mxu0 %v1570
        %1586 = vmatpush.bf16.msra.mxu0 %v1569
        %1587 = vmatpush.bf16.msra.mxu0 %v1568
        %1588 = vmatpush.bf16.msra.mxu0 %v1567
        %1589 = vmatpush.bf16.msra.mxu0 %v1566
        %1590 = vmatmul.bf16.gmra.mxu0 %v480
        %v1591 = vpop.f32.mrf.mxu0
        %v1592 = vadd.f32 0.0, %v1591
        %v1593 = vpop.f32.mrf.mxu0
        %v1594 = vadd.f32 0.0, %v1593
        %1595 = vmatmul.bf16.gmra.mxu0 %v481
        %v1596 = vpop.f32.mrf.mxu0
        %v1597 = vadd.f32 0.0, %v1596
        %v1598 = vpop.f32.mrf.mxu0
        %v1599 = vadd.f32 0.0, %v1598
        %1600 = vmatmul.bf16.gmra.mxu0 %v482
        %v1601 = vpop.f32.mrf.mxu0
        %v1602 = vadd.f32 0.0, %v1601
        %v1603 = vpop.f32.mrf.mxu0
        %v1604 = vadd.f32 0.0, %v1603
        %1605 = vmatmul.bf16.gmra.mxu0 %v483
        %v1606 = vpop.f32.mrf.mxu0
        %v1607 = vadd.f32 0.0, %v1606
        %v1608 = vpop.f32.mrf.mxu0
        %v1609 = vadd.f32 0.0, %v1608
        %1610 = vmatmul.bf16.gmra.mxu0 %v484
        %v1611 = vpop.f32.mrf.mxu0
        %v1612 = vadd.f32 0.0, %v1611
        %v1613 = vpop.f32.mrf.mxu0
        %v1614 = vadd.f32 0.0, %v1613
        %1615 = vmatmul.bf16.gmra.mxu0 %v485
        %v1616 = vpop.f32.mrf.mxu0
        %v1617 = vadd.f32 0.0, %v1616
        %v1618 = vpop.f32.mrf.mxu0
        %v1619 = vadd.f32 0.0, %v1618
        %1620 = vmatmul.bf16.gmra.mxu0 %v486
        %v1621 = vpop.f32.mrf.mxu0
        %v1622 = vadd.f32 0.0, %v1621
        %v1623 = vpop.f32.mrf.mxu0
        %v1624 = vadd.f32 0.0, %v1623
        %1625 = vmatmul.bf16.gmra.mxu0 %v487
        %v1626 = vpop.f32.mrf.mxu0
        %v1627 = vadd.f32 0.0, %v1626
        %v1628 = vpop.f32.mrf.mxu0
        %v1629 = vadd.f32 0.0, %v1628
        %1630 = vmatmul.bf16.gmra.mxu0 %v488
        %v1631 = vpop.f32.mrf.mxu0
        %v1632 = vadd.f32 0.0, %v1631
        %v1633 = vpop.f32.mrf.mxu0
        %v1634 = vadd.f32 0.0, %v1633
        %1635 = vmatmul.bf16.gmra.mxu0 %v633
        %v1636 = vpop.f32.mrf.mxu0
        %v1637 = vadd.f32 0.0, %v1636
        %v1638 = vpop.f32.mrf.mxu0
        %v1639 = vadd.f32 0.0, %v1638
        %1640 = vmatmul.bf16.gmra.mxu0 %v634
        %v1641 = vpop.f32.mrf.mxu0
        %v1642 = vadd.f32 0.0, %v1641
        %v1643 = vpop.f32.mrf.mxu0
        %v1644 = vadd.f32 0.0, %v1643
        %1645 = vmatmul.bf16.gmra.mxu0 %v635
        %v1646 = vpop.f32.mrf.mxu0
        %v1647 = vadd.f32 0.0, %v1646
        %v1648 = vpop.f32.mrf.mxu0
        %v1649 = vadd.f32 0.0, %v1648
        %1650 = vdwg.mxu0
        %v1651 = vadd.f32 %v1458, %v1592
        %v1652 = vadd.f32 %v1460, %v1594
        %v1653 = vadd.f32 %v1463, %v1597
        %v1654 = vadd.f32 %v1465, %v1599
        %v1655 = vadd.f32 %v1468, %v1602
        %v1656 = vadd.f32 %v1470, %v1604
        %v1657 = vadd.f32 %v1473, %v1607
        %v1658 = vadd.f32 %v1475, %v1609
        %v1659 = vadd.f32 %v1478, %v1612
        %v1660 = vadd.f32 %v1480, %v1614
        %v1661 = vadd.f32 %v1483, %v1617
        %v1662 = vadd.f32 %v1485, %v1619
        %v1663 = vadd.f32 %v1488, %v1622
        %v1664 = vadd.f32 %v1490, %v1624
        %v1665 = vadd.f32 %v1493, %v1627
        %v1666 = vadd.f32 %v1495, %v1629
        %v1667 = vadd.f32 %v1498, %v1632
        %v1668 = vadd.f32 %v1500, %v1634
        %v1669 = vadd.f32 %v1503, %v1637
        %v1670 = vadd.f32 %v1505, %v1639
        %v1671 = vadd.f32 %v1508, %v1642
        %v1672 = vadd.f32 %v1510, %v1644
        %v1673 = vadd.f32 %v1513, %v1647
        %v1674 = vadd.f32 %v1515, %v1649
        %v1675 = vrot.slane %v1651, 2
        %v1676 = vrot.slane %v1652, 2
        %v1677 = vrot.slane %v1653, 2
        %v1678 = vrot.slane %v1654, 2
        %v1679 = vrot.slane %v1655, 2
        %v1680 = vrot.slane %v1656, 2
        %v1681 = vrot.slane %v1657, 2
        %v1682 = vrot.slane %v1658, 2
        %v1683 = vrot.slane %v1659, 2
        %v1684 = vrot.slane %v1660, 2
        %v1685 = vrot.slane %v1661, 2
        %v1686 = vrot.slane %v1662, 2
        %v1687 = vrot.slane %v1663, 2
        %v1688 = vrot.slane %v1664, 2
        %v1689 = vrot.slane %v1665, 2
        %v1690 = vrot.slane %v1666, 2
        %v1691 = vrot.slane %v1667, 2
        %v1692 = vrot.slane %v1668, 2
        %v1693 = vrot.slane %v1669, 2
        %v1694 = vrot.slane %v1670, 2
        %v1695 = vrot.slane %v1671, 2
        %v1696 = vrot.slane %v1672, 2
        %v1697 = vrot.slane %v1673, 2
        %v1698 = vrot.slane %v1674, 2
        %vm1699 = vcmp.lt.s32.totalorder %v1215, 6
        %v1700 = vsel %vm1699, %v1697, %v1698
        %v1701 = vsel %vm1699, %v1696, %v1697
        %v1702 = vsel %vm1699, %v1694, %v1695
        %v1703 = vsel %vm1699, %v1693, %v1694
        %v1704 = vsel %vm1699, %v1691, %v1692
        %v1705 = vsel %vm1699, %v1690, %v1691
        %v1706 = vsel %vm1699, %v1688, %v1689
        %v1707 = vsel %vm1699, %v1687, %v1688
        %v1708 = vsel %vm1699, %v1685, %v1686
        %v1709 = vsel %vm1699, %v1684, %v1685
        %v1710 = vsel %vm1699, %v1682, %v1683
        %v1711 = vsel %vm1699, %v1681, %v1682
        %v1712 = vsel %vm1699, %v1679, %v1680
        %v1713 = vsel %vm1699, %v1678, %v1679
        %v1714 = vsel %vm1699, %v1676, %v1677
        %v1715 = vsel %vm1699, %v1675, %v1676
        %v1716 = vadd.f32 %v1233, %v1715
        %v1717 = vadd.f32 %v1234, %v1714
        %v1718 = vadd.f32 %v1235, %v1713
        %v1719 = vadd.f32 %v1236, %v1712
        %v1720 = vadd.f32 %v1237, %v1711
        %v1721 = vadd.f32 %v1238, %v1710
        %v1722 = vadd.f32 %v1239, %v1709
        %v1723 = vadd.f32 %v1240, %v1708
        %v1724 = vadd.f32 %v1241, %v1707
        %v1725 = vadd.f32 %v1242, %v1706
        %v1726 = vadd.f32 %v1243, %v1705
        %v1727 = vadd.f32 %v1244, %v1704
        %v1728 = vadd.f32 %v1245, %v1703
        %v1729 = vadd.f32 %v1246, %v1702
        %v1730 = vadd.f32 %v1247, %v1701
        %v1731 = vadd.f32 %v1248, %v1700
        %v1732 = vld [vmem:[%s2] sm:$0x1]
        %v1734 = vperm.slane %v1732, 0
        %v1736 = vadd.f32 %v1716, %v1734
        %v1737 = vadd.f32 %v1717, %v1734
        %v1738 = vadd.f32 %v1718, %v1734
        %v1739 = vadd.f32 %v1719, %v1734
        %v1740 = vadd.f32 %v1720, %v1734
        %v1741 = vadd.f32 %v1721, %v1734
        %v1742 = vadd.f32 %v1722, %v1734
        %v1743 = vadd.f32 %v1723, %v1734
        %v1744 = vadd.f32 %v1724, %v1734
        %v1745 = vadd.f32 %v1725, %v1734
        %v1746 = vadd.f32 %v1726, %v1734
        %v1747 = vadd.f32 %v1727, %v1734
        %v1748 = vadd.f32 %v1728, %v1734
        %v1749 = vadd.f32 %v1729, %v1734
        %v1750 = vadd.f32 %v1730, %v1734
        %v1751 = vadd.f32 %v1731, %v1734
        %v1752 = vmax.f32 %v1736, 0.0
        %v1753 = vmax.f32 %v1737, 0.0
        %v1754 = vmax.f32 %v1738, 0.0
        %v1755 = vmax.f32 %v1739, 0.0
        %v1756 = vmax.f32 %v1740, 0.0
        %v1757 = vmax.f32 %v1741, 0.0
        %v1758 = vmax.f32 %v1742, 0.0
        %v1759 = vmax.f32 %v1743, 0.0
        %v1760 = vmax.f32 %v1744, 0.0
        %v1761 = vmax.f32 %v1745, 0.0
        %v1762 = vmax.f32 %v1746, 0.0
        %v1763 = vmax.f32 %v1747, 0.0
        %v1764 = vmax.f32 %v1748, 0.0
        %v1765 = vmax.f32 %v1749, 0.0
        %v1766 = vmax.f32 %v1750, 0.0
        %v1767 = vmax.f32 %v1751, 0.0
        %1768 = vst [vmem:[%s221] sm:$0xff] %v1752
        %1769 = vst [vmem:[%s221 + $0x8] sm:$0xff] %v1753
        %1770 = vst [vmem:[%s221 + $0x10] sm:$0xff] %v1754
        %1771 = vst [vmem:[%s221 + $0x18] sm:$0xff] %v1755
        %1772 = vst [vmem:[%s221 + $0x20] sm:$0xff] %v1756
        %1773 = vst [vmem:[%s221 + $0x28] sm:$0xff] %v1757
        %1774 = vst [vmem:[%s221 + $0x30] sm:$0xff] %v1758
        %1775 = vst [vmem:[%s221 + $0x38] sm:$0xff] %v1759
        %1776 = vst [vmem:[%s221 + $0x40] sm:$0xff] %v1760
        %1777 = vst [vmem:[%s221 + $0x48] sm:$0xff] %v1761
        %1778 = vst [vmem:[%s221 + $0x50] sm:$0xff] %v1762
        %1779 = vst [vmem:[%s221 + $0x58] sm:$0xff] %v1763
        %1780 = vst [vmem:[%s221 + $0x60] sm:$0xff] %v1764
        %1781 = vst [vmem:[%s221 + $0x68] sm:$0xff] %v1765
        %1782 = vst [vmem:[%s221 + $0x70] sm:$0xff] %v1766
        %1783 = vst [vmem:[%s221 + $0x78] sm:$0xff] %v1767
        %s1784 = sand.u32 %s111, 1
        %s1785 = scalar_lea.sflag [#allocation4], %s1784
        %s1786 = sand.u32 %s111, 1
        %s1787 = smul.addr %s1786, 128
        %s1788 = scalar_lea.vmem [#allocation7], %s1787
        // Predicated region
        $region41: #{tpu_custom_call.1} parent=31 // pred_check
          %p1789 = pneg %p121
        $region42: #{tpu_custom_call.1} parent=31 // pred_check_branch
          %1791 = sbr.rel (%p1789) target = $region44
        $region43: #{tpu_custom_call.1} parent=31 // pred_region
          %s1792 = smul.u32 8, %s26
          %1794 = vsyncadd %s1785, 0
          %s1795 = smul.addr %s1792, 2
          %s1796 = smul.addr %s25, 32
          %s1797 = sadd.s32 %s1795, %s1796
          %s1798 = smul.addr %s1797, 8
          %s1799 = scalar_lea.hbm %s3, %s1798
          %s1800 = sshll.u32 %s1788, 4
          %s1801 = int_to_ptr.vmem [resolvable:$true] %s1800
          %s1802 = sshll.u32 %s1799, 4
          %s1803 = int_to_ptr.hbm [resolvable:$true] %s1802
          %1808 = dma.vmem_to_hbm [thread:$0]  %s1801, 2048, %s1803, %s1785, 128, 128, 8
        $region44: #{tpu_custom_call.1} parent=31 // pred_fallthru
          _
      $region32: #{tpu_custom_call.1} parent=5 // pred_fallthru
        _
      %p1809 = scmp.le.s32.totalorder 2, %s16
      // Predicated region
      $region45: #{tpu_custom_call.1} parent=5 // pred_check
        %p1810 = pneg %p1809
      $region46: #{tpu_custom_call.1} parent=5 // pred_check_branch
        %1812 = sbr.rel (%p1810) target = $region48
      $region47: #{tpu_custom_call.1} parent=5 // pred_region
        %s1813 = ssub.s32 %s16, 2
        // Predicated region
        $region49: #{tpu_custom_call.1} parent=47 // pred_check
          %p1814 = pneg %p127
        $region50: #{tpu_custom_call.1} parent=47 // pred_check_branch
          %1816 = sbr.rel (%p1814) target = $region52
        $region51: #{tpu_custom_call.1} parent=47 // pred_region
          %s1817 = sand.u32 %s112, 1
          %s1818 = scalar_lea.sflag [#allocation4], %s1817
          %s1819 = sand.u32 %s112, 1
          %s1820 = smul.addr %s1819, 128
          %s1821 = scalar_lea.vmem [#allocation7], %s1820
          %1823 = dma.done %s1818, 2048
        $region52: #{tpu_custom_call.1} parent=47 // pred_fallthru
          _
      $region48: #{tpu_custom_call.1} parent=5 // pred_fallthru
        _
    $region6: #{tpu_custom_call.1} parent=1 // loop_footer
      %s20 = sadd.s32 1, %s16
    $region7: #{tpu_custom_call.1} parent=1 // loop_footer_branch
      %15 = sbr.rel target = $region3
    $region8: #{tpu_custom_call.1} parent=1 // loop_exit
      _
    %1824 = vsyncpa [#allocation3], 1
    %s1825 = scalar_lea.sflag [#allocation3], 1
    %1826 = vsyncpa %s1825, 1
    %1827 = vsyncpa [#allocation6], 1
    %1828 = vsyncpa [#allocation4], 1
    %s1829 = scalar_lea.sflag [#allocation4], 1
    %1830 = vsyncpa %s1829, 1

</llo_original>
